<compile_context>
chip_gen: v7x
topology: tpu7x:2x2x1
jax: 0.10.0
libtpu: 0.0.40
codegen_flags: <defaults>
</compile_context>

<pallas_src>
import jax
import jax.numpy as jnp
from jax.experimental import pallas as pl
from jax.experimental.pallas import tpu as pltpu

B = 2                       # batch
H = W = 28                  # spatial input (forced by fc1 = Linear(4*26*26, 10))
OC = 4                      # conv output channels
KH = KW = 3                 # conv kernel
OH = OW = H - KH + 1        # 26
OWIDE = OH * W              # 728 real lanes per row-group (26 rows x 28 cols, 2 junk cols/row)
OWIDE_PAD = 768             # 6*128 -> unmasked loads/stores, aligned FC K dim
FLAT = OC * OH * OW         # 2704 (torch flatten size)
NCLS = 10
R = OC * B                  # 8 packed sublane rows; row r = c*B + b (c-major)
XPAD = 896                  # 7*128 >= (KH-1)*W + (KW-1) + OWIDE_PAD = 58 + 768


def fused_cnn_kernel(x_ref, w_ref, b_ref, fcw_ref, fcb_ref, final_ref, conv_ref):
    """Fused conv3x3(C_in=1) + bias + ReLU + Linear, whole batch, one grid step.

    x_ref:     VMEM (R, XPAD)            images replicated per out-channel, zero-padded
    w_ref:     VMEM (R, KH*KW)           per-row conv weights (row r=c*B+b -> channel c)
    b_ref:     VMEM (R, 1)               per-row conv bias
    fcw_ref:   VMEM (OC, NCLS, OWIDE_PAD) fc weights (zeros in junk lanes)
    fcb_ref:   VMEM (1, NCLS)            fc bias
    final_ref: VMEM (B, NCLS)            logits
    conv_ref:  VMEM (R, OWIDE_PAD)       dense pre-ReLU conv slab (cropped host-side)
    """
    x = x_ref[...]                                   # (8, 896)
    w = w_ref[...]                                   # (8, 9)

    # Conv: 9 full-sublane FMAs on one (8, 768) accumulator (VPU job; no MXU/im2col).
    acc = jnp.zeros((R, OWIDE_PAD), dtype=jnp.float32)
    for kh in range(KH):
        for kw in range(KW):
            t = kh * KW + kw
            off = kh * W + kw
            win = x[:, off:off + OWIDE_PAD]          # (8, 768), lane-shifted view
            acc = acc + win * w[:, t:t + 1]          # (8,1) lane-broadcast per tap
    conv = acc + b_ref[...]                          # bias (8,1) lane-broadcast

    conv_ref[...] = conv                             # one dense, unmasked store

    # ReLU stays in-registers for the fused FC (not an output anymore).
    relu = jnp.maximum(conv, 0.0)

    # Fused FC: 4 tiny trans_b MXU matmuls on contiguous 2-sublane channel slices.
    acc_fc = jnp.zeros((B, NCLS), dtype=jnp.float32)
    for c in range(OC):
        relu_c = relu[c * B:(c + 1) * B, :]          # (B, 768), rows b0,b1 of channel c
        acc_fc = acc_fc + jax.lax.dot_general(
            relu_c, fcw_ref[c],                      # (B, 768) x (NCLS, 768)
            dimension_numbers=(((1,), (1,)), ((), ())),
            preferred_element_type=jnp.float32)

    final_ref[...] = acc_fc + fcb_ref[...]


def prepare_params(conv_w, conv_b, fc_w, fc_b):
    """One-time (init-time) remap of the constant weights into kernel layouts."""
    conv_w = conv_w.astype(jnp.float32)
    conv_b = conv_b.astype(jnp.float32)
    fc_w = fc_w.astype(jnp.float32)
    fc_b = fc_b.astype(jnp.float32)

    # Per-row conv weight / bias columns; row r = c*B + b carries channel c's scalars.
    w_flat = conv_w.reshape(OC, KH * KW)
    w_col = jnp.broadcast_to(w_flat[:, None, :], (OC, B, KH * KW)).reshape(R, KH * KW)
    b_col = jnp.broadcast_to(conv_b[:, None], (OC, B)).reshape(R, 1)

    # FC weights remapped to the (OC, NCLS, OWIDE_PAD) slab: torch flat index
    # c*676 + h*26 + w lands at [c, n, h*28 + w]; junk columns (w=26,27) and the
    # 40 pad lanes (>=728) are zero, so junk conv values contribute exactly 0.
    fcw = fc_w.reshape(NCLS, OC, OH, OW)
    fcw = jnp.pad(fcw, ((0, 0), (0, 0), (0, 0), (0, W - OW)))
    fcw = fcw.reshape(NCLS, OC, OWIDE)
    fcw = jnp.pad(fcw, ((0, 0), (0, 0), (0, OWIDE_PAD - OWIDE)))
    fcw = fcw.transpose(1, 0, 2)                     # (OC, NCLS, 768)

    fcb = fc_b.reshape(1, NCLS)
    return (w_col, b_col, fcw, fcb)


@jax.jit
def simple_cnn_forward(x, params):
    """Returns (final_out, conv1_out, relu_out) exactly like the torch module."""
    w_col, b_col, fcw, fcb = params
    x = x.astype(jnp.float32)

    # Per-call host prep: row-flatten, zero-pad, replicate per output channel (tiny).
    x_flat = jnp.pad(x.reshape(B, H * W), ((0, 0), (0, XPAD - H * W)))
    x_packed = jnp.broadcast_to(x_flat[None], (OC, B, XPAD)).reshape(R, XPAD)

    final, conv_slab = pl.pallas_call(
        fused_cnn_kernel,
        out_shape=(jax.ShapeDtypeStruct((B, NCLS), jnp.float32),
                   jax.ShapeDtypeStruct((R, OWIDE_PAD), jnp.float32)),
        in_specs=[
            pl.BlockSpec(memory_space=pltpu.VMEM),   # x slab
            pl.BlockSpec(memory_space=pltpu.VMEM),   # conv weight columns
            pl.BlockSpec(memory_space=pltpu.VMEM),   # conv bias column
            pl.BlockSpec(memory_space=pltpu.VMEM),   # fc weight slab
            pl.BlockSpec(memory_space=pltpu.VMEM),   # fc bias
        ],
        out_specs=(
            pl.BlockSpec(memory_space=pltpu.VMEM),
            pl.BlockSpec(memory_space=pltpu.VMEM),
        ),
        # No grid: the whole B=2 batch (< 0.5 MiB of VMEM) is one step on every
        # generation; on v7x a parallel batch axis would only pay off at larger B.
    )(x_packed, w_col, b_col, fcw, fcb)

    # Free host-side views: crop junk lanes/cols, recover torch's NCHW tensors.
    conv_out = conv_slab[:, :OWIDE].reshape(OC, B, OH, W)[..., :OW].transpose(1, 0, 2, 3)
    relu_out = jnp.maximum(conv_out, 0.0)            # one fused XLA op on returned slab
    return final, conv_out, relu_out


def _reference(x, conv_w, conv_b, fc_w, fc_b):
    conv = jax.lax.conv_general_dilated(
        x, conv_w, window_strides=(1, 1), padding="VALID",
        dimension_numbers=("NCHW", "OIHW", "NCHW")) + conv_b.reshape(1, OC, 1, 1)
    relu = jnp.maximum(conv, 0.0)
    final = relu.reshape(B, FLAT) @ fc_w.T + fc_b
    return final, conv, relu


if __name__ == "__main__":
    key = jax.random.PRNGKey(0)
    k1, k2, k3, k4, kx = jax.random.split(key, 5)

    # deterministic params (PyTorch-default-like uniform bounds: 1/sqrt(fan_in))
    conv_bound = 1.0 / 3.0                            # fan_in = 1*3*3 = 9
    fc_bound = 1.0 / (FLAT ** 0.5)
    conv_w = jax.random.uniform(k1, (OC, 1, KH, KW), jnp.float32, -conv_bound, conv_bound)
    conv_b = jax.random.uniform(k2, (OC,), jnp.float32, -conv_bound, conv_bound)
    fc_w = jax.random.uniform(k3, (NCLS, FLAT), jnp.float32, -fc_bound, fc_bound)
    fc_b = jax.random.uniform(k4, (NCLS,), jnp.float32, -fc_bound, fc_bound)

    x = jax.random.normal(kx, (B, 1, H, W), jnp.float32)

    params = jax.block_until_ready(prepare_params(conv_w, conv_b, fc_w, fc_b))

    final_out, conv1_out, relu_out = jax.block_until_ready(
        simple_cnn_forward(x, params))

    ref_final, ref_conv, ref_relu = _reference(x, conv_w, conv_b, fc_w, fc_b)
    assert final_out.shape == (B, NCLS)
    assert conv1_out.shape == (B, OC, OH, OW) and relu_out.shape == (B, OC, OH, OW)
    assert jnp.allclose(conv1_out, ref_conv, atol=1e-3, rtol=1e-3)
    assert jnp.allclose(relu_out, ref_relu, atol=1e-3, rtol=1e-3)
    assert jnp.allclose(final_out, ref_final, atol=1e-2, rtol=1e-2)

    print("KERNEL_OK")
</pallas_src>

<mosaic_0001>
module attributes {stable_mosaic.version = 11 : i64} {
  func.func @fused_cnn_kernel(%arg0: memref<8x896xf32, #tpu.memory_space<vmem>>, %arg1: memref<8x9xf32, #tpu.memory_space<vmem>>, %arg2: memref<8x1xf32, #tpu.memory_space<vmem>>, %arg3: memref<4x10x768xf32, #tpu.memory_space<vmem>>, %arg4: memref<1x10xf32, #tpu.memory_space<vmem>>, %arg5: memref<2x10xf32, #tpu.memory_space<vmem>>, %arg6: memref<8x768xf32, #tpu.memory_space<vmem>>) attributes {dimension_semantics = [], scalar_prefetch = 0 : i64, scratch_operands = 0 : i64, tpu.core_type = #tpu.core_type<tc>} {
    %c0 = arith.constant 0 : index
    %c0_0 = arith.constant 0 : index
    %0 = vector.load %arg0[%c0, %c0_0] : memref<8x896xf32, #tpu.memory_space<vmem>>, vector<8x896xf32>
    %c0_1 = arith.constant 0 : index
    %c0_2 = arith.constant 0 : index
    %1 = vector.load %arg1[%c0_1, %c0_2] : memref<8x9xf32, #tpu.memory_space<vmem>>, vector<8x9xf32>
    %cst = arith.constant 0.000000e+00 : f32
    %2 = vector.broadcast %cst : f32 to vector<8x768xf32>
    %3 = vector.extract_strided_slice %0 {offsets = [0, 0], sizes = [8, 768], strides = [1, 1]} : vector<8x896xf32> to vector<8x768xf32>
    %4 = vector.extract_strided_slice %1 {offsets = [0, 0], sizes = [8, 1], strides = [1, 1]} : vector<8x9xf32> to vector<8x1xf32>
    %5 = vector.broadcast %4 : vector<8x1xf32> to vector<8x768xf32>
    %6 = arith.mulf %3, %5 : vector<8x768xf32>
    %7 = arith.addf %2, %6 : vector<8x768xf32>
    %8 = vector.extract_strided_slice %0 {offsets = [0, 1], sizes = [8, 768], strides = [1, 1]} : vector<8x896xf32> to vector<8x768xf32>
    %9 = vector.extract_strided_slice %1 {offsets = [0, 1], sizes = [8, 1], strides = [1, 1]} : vector<8x9xf32> to vector<8x1xf32>
    %10 = vector.broadcast %9 : vector<8x1xf32> to vector<8x768xf32>
    %11 = arith.mulf %8, %10 : vector<8x768xf32>
    %12 = arith.addf %7, %11 : vector<8x768xf32>
    %13 = vector.extract_strided_slice %0 {offsets = [0, 2], sizes = [8, 768], strides = [1, 1]} : vector<8x896xf32> to vector<8x768xf32>
    %14 = vector.extract_strided_slice %1 {offsets = [0, 2], sizes = [8, 1], strides = [1, 1]} : vector<8x9xf32> to vector<8x1xf32>
    %15 = vector.broadcast %14 : vector<8x1xf32> to vector<8x768xf32>
    %16 = arith.mulf %13, %15 : vector<8x768xf32>
    %17 = arith.addf %12, %16 : vector<8x768xf32>
    %18 = vector.extract_strided_slice %0 {offsets = [0, 28], sizes = [8, 768], strides = [1, 1]} : vector<8x896xf32> to vector<8x768xf32>
    %19 = vector.extract_strided_slice %1 {offsets = [0, 3], sizes = [8, 1], strides = [1, 1]} : vector<8x9xf32> to vector<8x1xf32>
    %20 = vector.broadcast %19 : vector<8x1xf32> to vector<8x768xf32>
    %21 = arith.mulf %18, %20 : vector<8x768xf32>
    %22 = arith.addf %17, %21 : vector<8x768xf32>
    %23 = vector.extract_strided_slice %0 {offsets = [0, 29], sizes = [8, 768], strides = [1, 1]} : vector<8x896xf32> to vector<8x768xf32>
    %24 = vector.extract_strided_slice %1 {offsets = [0, 4], sizes = [8, 1], strides = [1, 1]} : vector<8x9xf32> to vector<8x1xf32>
    %25 = vector.broadcast %24 : vector<8x1xf32> to vector<8x768xf32>
    %26 = arith.mulf %23, %25 : vector<8x768xf32>
    %27 = arith.addf %22, %26 : vector<8x768xf32>
    %28 = vector.extract_strided_slice %0 {offsets = [0, 30], sizes = [8, 768], strides = [1, 1]} : vector<8x896xf32> to vector<8x768xf32>
    %29 = vector.extract_strided_slice %1 {offsets = [0, 5], sizes = [8, 1], strides = [1, 1]} : vector<8x9xf32> to vector<8x1xf32>
    %30 = vector.broadcast %29 : vector<8x1xf32> to vector<8x768xf32>
    %31 = arith.mulf %28, %30 : vector<8x768xf32>
    %32 = arith.addf %27, %31 : vector<8x768xf32>
    %33 = vector.extract_strided_slice %0 {offsets = [0, 56], sizes = [8, 768], strides = [1, 1]} : vector<8x896xf32> to vector<8x768xf32>
    %34 = vector.extract_strided_slice %1 {offsets = [0, 6], sizes = [8, 1], strides = [1, 1]} : vector<8x9xf32> to vector<8x1xf32>
    %35 = vector.broadcast %34 : vector<8x1xf32> to vector<8x768xf32>
    %36 = arith.mulf %33, %35 : vector<8x768xf32>
    %37 = arith.addf %32, %36 : vector<8x768xf32>
    %38 = vector.extract_strided_slice %0 {offsets = [0, 57], sizes = [8, 768], strides = [1, 1]} : vector<8x896xf32> to vector<8x768xf32>
    %39 = vector.extract_strided_slice %1 {offsets = [0, 7], sizes = [8, 1], strides = [1, 1]} : vector<8x9xf32> to vector<8x1xf32>
    %40 = vector.broadcast %39 : vector<8x1xf32> to vector<8x768xf32>
    %41 = arith.mulf %38, %40 : vector<8x768xf32>
    %42 = arith.addf %37, %41 : vector<8x768xf32>
    %43 = vector.extract_strided_slice %0 {offsets = [0, 58], sizes = [8, 768], strides = [1, 1]} : vector<8x896xf32> to vector<8x768xf32>
    %44 = vector.extract_strided_slice %1 {offsets = [0, 8], sizes = [8, 1], strides = [1, 1]} : vector<8x9xf32> to vector<8x1xf32>
    %45 = vector.broadcast %44 : vector<8x1xf32> to vector<8x768xf32>
    %46 = arith.mulf %43, %45 : vector<8x768xf32>
    %47 = arith.addf %42, %46 : vector<8x768xf32>
    %c0_3 = arith.constant 0 : index
    %c0_4 = arith.constant 0 : index
    %48 = vector.load %arg2[%c0_3, %c0_4] : memref<8x1xf32, #tpu.memory_space<vmem>>, vector<8x1xf32>
    %49 = vector.broadcast %48 : vector<8x1xf32> to vector<8x768xf32>
    %50 = arith.addf %47, %49 : vector<8x768xf32>
    %c0_5 = arith.constant 0 : index
    %c0_6 = arith.constant 0 : index
    %51 = vector.load %arg6[%c0_5, %c0_6] : memref<8x768xf32, #tpu.memory_space<vmem>>, vector<8x768xf32>
    tpu.vector_store %arg6[%c0_5, %c0_6], %50 {strides = array<i32>} : memref<8x768xf32, #tpu.memory_space<vmem>>, vector<8x768xf32>,
    %cst_7 = arith.constant 0.000000e+00 : f32
    %52 = vector.broadcast %cst_7 : f32 to vector<8x768xf32>
    %53 = arith.maximumf %50, %52 : vector<8x768xf32>
    %cst_8 = arith.constant 0.000000e+00 : f32
    %54 = vector.broadcast %cst_8 : f32 to vector<2x10xf32>
    %55 = vector.extract_strided_slice %53 {offsets = [0, 0], sizes = [2, 768], strides = [1, 1]} : vector<8x768xf32> to vector<2x768xf32>
    %c0_9 = arith.constant 0 : index
    %c0_10 = arith.constant 0 : index
    %c0_11 = arith.constant 0 : index
    %56 = vector.load %arg3[%c0_9, %c0_10, %c0_11] : memref<4x10x768xf32, #tpu.memory_space<vmem>>, vector<1x10x768xf32>
    %57 = vector.shape_cast %56 : vector<1x10x768xf32> to vector<10x768xf32>
    %cst_12 = arith.constant dense<0.000000e+00> : vector<2x10xf32>
    %58 = tpu.matmul %55, %57, %cst_12 {dimension_numbers = #tpu.dot_dimension_numbers<[1], [1], [0], [0], [0, 0, 1, 0], [], []>} : vector<2x768xf32>, vector<10x768xf32>, vector<2x10xf32> -> vector<2x10xf32>
    %59 = arith.addf %54, %58 : vector<2x10xf32>
    %60 = vector.extract_strided_slice %53 {offsets = [2, 0], sizes = [2, 768], strides = [1, 1]} : vector<8x768xf32> to vector<2x768xf32>
    %c1 = arith.constant 1 : index
    %c0_13 = arith.constant 0 : index
    %c0_14 = arith.constant 0 : index
    %61 = vector.load %arg3[%c1, %c0_13, %c0_14] : memref<4x10x768xf32, #tpu.memory_space<vmem>>, vector<1x10x768xf32>
    %62 = vector.shape_cast %61 : vector<1x10x768xf32> to vector<10x768xf32>
    %cst_15 = arith.constant dense<0.000000e+00> : vector<2x10xf32>
    %63 = tpu.matmul %60, %62, %cst_15 {dimension_numbers = #tpu.dot_dimension_numbers<[1], [1], [0], [0], [0, 0, 1, 0], [], []>} : vector<2x768xf32>, vector<10x768xf32>, vector<2x10xf32> -> vector<2x10xf32>
    %64 = arith.addf %59, %63 : vector<2x10xf32>
    %65 = vector.extract_strided_slice %53 {offsets = [4, 0], sizes = [2, 768], strides = [1, 1]} : vector<8x768xf32> to vector<2x768xf32>
    %c2 = arith.constant 2 : index
    %c0_16 = arith.constant 0 : index
    %c0_17 = arith.constant 0 : index
    %66 = vector.load %arg3[%c2, %c0_16, %c0_17] : memref<4x10x768xf32, #tpu.memory_space<vmem>>, vector<1x10x768xf32>
    %67 = vector.shape_cast %66 : vector<1x10x768xf32> to vector<10x768xf32>
    %cst_18 = arith.constant dense<0.000000e+00> : vector<2x10xf32>
    %68 = tpu.matmul %65, %67, %cst_18 {dimension_numbers = #tpu.dot_dimension_numbers<[1], [1], [0], [0], [0, 0, 1, 0], [], []>} : vector<2x768xf32>, vector<10x768xf32>, vector<2x10xf32> -> vector<2x10xf32>
    %69 = arith.addf %64, %68 : vector<2x10xf32>
    %70 = vector.extract_strided_slice %53 {offsets = [6, 0], sizes = [2, 768], strides = [1, 1]} : vector<8x768xf32> to vector<2x768xf32>
    %c3 = arith.constant 3 : index
    %c0_19 = arith.constant 0 : index
    %c0_20 = arith.constant 0 : index
    %71 = vector.load %arg3[%c3, %c0_19, %c0_20] : memref<4x10x768xf32, #tpu.memory_space<vmem>>, vector<1x10x768xf32>
    %72 = vector.shape_cast %71 : vector<1x10x768xf32> to vector<10x768xf32>
    %cst_21 = arith.constant dense<0.000000e+00> : vector<2x10xf32>
    %73 = tpu.matmul %70, %72, %cst_21 {dimension_numbers = #tpu.dot_dimension_numbers<[1], [1], [0], [0], [0, 0, 1, 0], [], []>} : vector<2x768xf32>, vector<10x768xf32>, vector<2x10xf32> -> vector<2x10xf32>
    %74 = arith.addf %69, %73 : vector<2x10xf32>
    %c0_22 = arith.constant 0 : index
    %c0_23 = arith.constant 0 : index
    %75 = vector.load %arg4[%c0_22, %c0_23] : memref<1x10xf32, #tpu.memory_space<vmem>>, vector<1x10xf32>
    %76 = vector.broadcast %75 : vector<1x10xf32> to vector<2x10xf32>
    %77 = arith.addf %74, %76 : vector<2x10xf32>
    %c0_24 = arith.constant 0 : index
    %c0_25 = arith.constant 0 : index
    %78 = vector.load %arg5[%c0_24, %c0_25] : memref<2x10xf32, #tpu.memory_space<vmem>>, vector<2x10xf32>
    tpu.vector_store %arg5[%c0_24, %c0_25], %77 {strides = array<i32>} : memref<2x10xf32, #tpu.memory_space<vmem>>, vector<2x10xf32>,
    return
  }
}

</mosaic_0001>

<llo_original>
// kernel: simple_cnn_forward.1
$region0: #{simple_cnn_forward.1}
  #allocation0 [shape = 'u32[]', space=smem, size = 0x4, offset = 0x4, fixed_abs, tag = 'smem constant byte address 0x4 - core index']
  #allocation1 [shape = 'u32[144,128]{1,0:T(1,128)}', space=vmem, size = 0x12000, scoped, tag = 'internal scratch']
  %s0 = inlined_call_operand.vmem [shape: f32[8,896], index: 0, kind: input, shape index: {}]
  %s1 = inlined_call_operand.vmem [shape: f32[8,9], index: 1, kind: input, shape index: {}]
  %s2 = inlined_call_operand.vmem [shape: f32[8,1], index: 2, kind: input, shape index: {}]
  %s3 = inlined_call_operand.vmem [shape: f32[4,10,768], index: 3, kind: input, shape index: {}]
  %s4 = inlined_call_operand.vmem [shape: f32[1,10], index: 4, kind: input, shape index: {}]
  %s5 = inlined_call_operand.hbm [shape: f32[2,10], index: 5, kind: output, shape index: {0}]
  %s6 = inlined_call_operand.vmem [shape: f32[8,768], index: 6, kind: output, shape index: {1}]
  %7 = xla_tuple %s5, %s6
  %s8 = sld [smem:[#allocation0]]
  $region38: #{simple_cnn_forward.1} parent=0
    _
  %s10 = ssub.s32 1, %s8
  %s11 = scalar_select 0, %s10, %s8
  $region1: #{simple_cnn_forward.1} parent=0
    #allocation2 [shape = 'u8[1024]{0}', space=vmem, size = 0x400, scoped, tag = 'output window, operand 0, single buffered']
    #allocation3 [shape = 's32[1]{0}', space=sflag, size = 0x4, scoped, tag = 'scoped memory for simple_cnn_forward.1']
    %12 = vsyncpa [#allocation3], 0
    // Predicated region
    $region2: #{simple_cnn_forward.1} parent=1 // pred_check
      _
    $region3: #{simple_cnn_forward.1} parent=1 // pred_check_branch
      %14 = sbr.rel (0) target = $region5
    $region4: #{simple_cnn_forward.1} parent=1 // pred_region
      _
    $region5: #{simple_cnn_forward.1} parent=1 // pred_fallthru
      _
    // Predicated region
    $region6: #{simple_cnn_forward.1} parent=1 // pred_check
      _
    $region7: #{simple_cnn_forward.1} parent=1 // pred_check_branch
      %16 = sbr.rel (0) target = $region9
    $region8: #{simple_cnn_forward.1} parent=1 // pred_region
      _
    $region9: #{simple_cnn_forward.1} parent=1 // pred_fallthru
      _
    // Predicated region
    $region10: #{simple_cnn_forward.1} parent=1 // pred_check
      _
    $region11: #{simple_cnn_forward.1} parent=1 // pred_check_branch
      %18 = sbr.rel (0) target = $region13
    $region12: #{simple_cnn_forward.1} parent=1 // pred_region
      _
    $region13: #{simple_cnn_forward.1} parent=1 // pred_fallthru
      _
    // Predicated region
    $region14: #{simple_cnn_forward.1} parent=1 // pred_check
      _
    $region15: #{simple_cnn_forward.1} parent=1 // pred_check_branch
      %20 = sbr.rel (0) target = $region17
    $region16: #{simple_cnn_forward.1} parent=1 // pred_region
      _
    $region17: #{simple_cnn_forward.1} parent=1 // pred_fallthru
      _
    // Predicated region
    $region18: #{simple_cnn_forward.1} parent=1 // pred_check
      _
    $region19: #{simple_cnn_forward.1} parent=1 // pred_check_branch
      %22 = sbr.rel (0) target = $region21
    $region20: #{simple_cnn_forward.1} parent=1 // pred_region
      _
    $region21: #{simple_cnn_forward.1} parent=1 // pred_fallthru
      _
    %v23 = vld [vmem:[%s0] sm:$0xff]
    %v24 = vld [vmem:[%s0 + $0x8] sm:$0xff]
    %v25 = vld [vmem:[%s0 + $0x10] sm:$0xff]
    %v26 = vld [vmem:[%s0 + $0x18] sm:$0xff]
    %v27 = vld [vmem:[%s0 + $0x20] sm:$0xff]
    %v28 = vld [vmem:[%s0 + $0x28] sm:$0xff]
    %v29 = vld [vmem:[%s0 + $0x30] sm:$0xff]
    %v30 = vld [vmem:[%s1] sm:$0xff]
    %32 = vset.pattern.permute.xlu0 0
    %33 = vperm.xlu0 %32, %v30
    %v34 = vpop.permute.xlu0 %33
    %v36 = vmul.f32 %v23, %v34
    %v37 = vmul.f32 %v24, %v34
    %v38 = vmul.f32 %v25, %v34
    %v39 = vmul.f32 %v26, %v34
    %v40 = vmul.f32 %v27, %v34
    %v41 = vmul.f32 %v28, %v34
    %v42 = vadd.f32 %v36, 0.0
    %v43 = vadd.f32 %v37, 0.0
    %v44 = vadd.f32 %v38, 0.0
    %v45 = vadd.f32 %v39, 0.0
    %v46 = vadd.f32 %v40, 0.0
    %v47 = vadd.f32 %v41, 0.0
    %48 = vset.pattern.permute.xlu0 1
    %49 = vperm.xlu0 %48, %v30
    %v50 = vpop.permute.xlu0 %49
    %v52 = vmul.f32 %v23, %v50
    %v53 = vmul.f32 %v24, %v50
    %v54 = vmul.f32 %v25, %v50
    %v55 = vmul.f32 %v26, %v50
    %v56 = vmul.f32 %v27, %v50
    %v57 = vmul.f32 %v28, %v50
    %v58 = vmul.f32 %v29, %v50
    %66 = vrot.lane.b32.xlu0 %v52, 127
    %v67 = vpop.permute.xlu0 %66
    %68 = vrot.lane.b32.xlu0 %v53, 127
    %v69 = vpop.permute.xlu0 %68
    %70 = vrot.lane.b32.xlu0 %v54, 127
    %v71 = vpop.permute.xlu0 %70
    %72 = vrot.lane.b32.xlu0 %v55, 127
    %v73 = vpop.permute.xlu0 %72
    %74 = vrot.lane.b32.xlu0 %v56, 127
    %v75 = vpop.permute.xlu0 %74
    %76 = vrot.lane.b32.xlu0 %v57, 127
    %v77 = vpop.permute.xlu0 %76
    %78 = vrot.lane.b32.xlu0 %v58, 127
    %v79 = vpop.permute.xlu0 %78
    %vm80 = vcmask 1039360
    %v81 = vsel %vm80, %v67, %v69
    %v82 = vsel %vm80, %v69, %v71
    %v83 = vsel %vm80, %v71, %v73
    %v84 = vsel %vm80, %v73, %v75
    %v85 = vsel %vm80, %v75, %v77
    %v86 = vsel %vm80, %v77, %v79
    %v93 = vadd.f32 %v42, %v81
    %v94 = vadd.f32 %v43, %v82
    %v95 = vadd.f32 %v44, %v83
    %v96 = vadd.f32 %v45, %v84
    %v97 = vadd.f32 %v46, %v85
    %v98 = vadd.f32 %v47, %v86
    %99 = vset.pattern.permute.xlu0 2
    %100 = vperm.xlu0 %99, %v30
    %v101 = vpop.permute.xlu0 %100
    %v103 = vmul.f32 %v23, %v101
    %v104 = vmul.f32 %v24, %v101
    %v105 = vmul.f32 %v25, %v101
    %v106 = vmul.f32 %v26, %v101
    %v107 = vmul.f32 %v27, %v101
    %v108 = vmul.f32 %v28, %v101
    %v109 = vmul.f32 %v29, %v101
    %117 = vrot.lane.b32.xlu0 %v103, 126
    %v118 = vpop.permute.xlu0 %117
    %119 = vrot.lane.b32.xlu0 %v104, 126
    %v120 = vpop.permute.xlu0 %119
    %121 = vrot.lane.b32.xlu0 %v105, 126
    %v122 = vpop.permute.xlu0 %121
    %123 = vrot.lane.b32.xlu0 %v106, 126
    %v124 = vpop.permute.xlu0 %123
    %125 = vrot.lane.b32.xlu0 %v107, 126
    %v126 = vpop.permute.xlu0 %125
    %127 = vrot.lane.b32.xlu0 %v108, 126
    %v128 = vpop.permute.xlu0 %127
    %129 = vrot.lane.b32.xlu0 %v109, 126
    %v130 = vpop.permute.xlu0 %129
    %vm131 = vcmask 1031168
    %v132 = vsel %vm131, %v118, %v120
    %v133 = vsel %vm131, %v120, %v122
    %v134 = vsel %vm131, %v122, %v124
    %v135 = vsel %vm131, %v124, %v126
    %v136 = vsel %vm131, %v126, %v128
    %v137 = vsel %vm131, %v128, %v130
    %v144 = vadd.f32 %v93, %v132
    %v145 = vadd.f32 %v94, %v133
    %v146 = vadd.f32 %v95, %v134
    %v147 = vadd.f32 %v96, %v135
    %v148 = vadd.f32 %v97, %v136
    %v149 = vadd.f32 %v98, %v137
    %150 = vset.pattern.permute.xlu0 3
    %151 = vperm.xlu0 %150, %v30
    %v152 = vpop.permute.xlu0 %151
    %v154 = vmul.f32 %v23, %v152
    %v155 = vmul.f32 %v24, %v152
    %v156 = vmul.f32 %v25, %v152
    %v157 = vmul.f32 %v26, %v152
    %v158 = vmul.f32 %v27, %v152
    %v159 = vmul.f32 %v28, %v152
    %v160 = vmul.f32 %v29, %v152
    %168 = vrot.lane.b32.xlu0 %v154, 100
    %v169 = vpop.permute.xlu0 %168
    %170 = vrot.lane.b32.xlu0 %v155, 100
    %v171 = vpop.permute.xlu0 %170
    %172 = vrot.lane.b32.xlu0 %v156, 100
    %v173 = vpop.permute.xlu0 %172
    %174 = vrot.lane.b32.xlu0 %v157, 100
    %v175 = vpop.permute.xlu0 %174
    %176 = vrot.lane.b32.xlu0 %v158, 100
    %v177 = vpop.permute.xlu0 %176
    %178 = vrot.lane.b32.xlu0 %v159, 100
    %v179 = vpop.permute.xlu0 %178
    %180 = vrot.lane.b32.xlu0 %v160, 100
    %v181 = vpop.permute.xlu0 %180
    %vm182 = vcmask 818176
    %v183 = vsel %vm182, %v169, %v171
    %v184 = vsel %vm182, %v171, %v173
    %v185 = vsel %vm182, %v173, %v175
    %v186 = vsel %vm182, %v175, %v177
    %v187 = vsel %vm182, %v177, %v179
    %v188 = vsel %vm182, %v179, %v181
    %v195 = vadd.f32 %v144, %v183
    %v196 = vadd.f32 %v145, %v184
    %v197 = vadd.f32 %v146, %v185
    %v198 = vadd.f32 %v147, %v186
    %v199 = vadd.f32 %v148, %v187
    %v200 = vadd.f32 %v149, %v188
    %201 = vset.pattern.permute.xlu0 4
    %202 = vperm.xlu0 %201, %v30
    %v203 = vpop.permute.xlu0 %202
    %v205 = vmul.f32 %v23, %v203
    %v206 = vmul.f32 %v24, %v203
    %v207 = vmul.f32 %v25, %v203
    %v208 = vmul.f32 %v26, %v203
    %v209 = vmul.f32 %v27, %v203
    %v210 = vmul.f32 %v28, %v203
    %v211 = vmul.f32 %v29, %v203
    %219 = vrot.lane.b32.xlu0 %v205, 99
    %v220 = vpop.permute.xlu0 %219
    %221 = vrot.lane.b32.xlu0 %v206, 99
    %v222 = vpop.permute.xlu0 %221
    %223 = vrot.lane.b32.xlu0 %v207, 99
    %v224 = vpop.permute.xlu0 %223
    %225 = vrot.lane.b32.xlu0 %v208, 99
    %v226 = vpop.permute.xlu0 %225
    %227 = vrot.lane.b32.xlu0 %v209, 99
    %v228 = vpop.permute.xlu0 %227
    %229 = vrot.lane.b32.xlu0 %v210, 99
    %v230 = vpop.permute.xlu0 %229
    %231 = vrot.lane.b32.xlu0 %v211, 99
    %v232 = vpop.permute.xlu0 %231
    %vm233 = vcmask 809984
    %v234 = vsel %vm233, %v220, %v222
    %v235 = vsel %vm233, %v222, %v224
    %v236 = vsel %vm233, %v224, %v226
    %v237 = vsel %vm233, %v226, %v228
    %v238 = vsel %vm233, %v228, %v230
    %v239 = vsel %vm233, %v230, %v232
    %v246 = vadd.f32 %v195, %v234
    %v247 = vadd.f32 %v196, %v235
    %v248 = vadd.f32 %v197, %v236
    %v249 = vadd.f32 %v198, %v237
    %v250 = vadd.f32 %v199, %v238
    %v251 = vadd.f32 %v200, %v239
    %252 = vset.pattern.permute.xlu0 5
    %253 = vperm.xlu0 %252, %v30
    %v254 = vpop.permute.xlu0 %253
    %v256 = vmul.f32 %v23, %v254
    %v257 = vmul.f32 %v24, %v254
    %v258 = vmul.f32 %v25, %v254
    %v259 = vmul.f32 %v26, %v254
    %v260 = vmul.f32 %v27, %v254
    %v261 = vmul.f32 %v28, %v254
    %v262 = vmul.f32 %v29, %v254
    %270 = vrot.lane.b32.xlu0 %v256, 98
    %v271 = vpop.permute.xlu0 %270
    %272 = vrot.lane.b32.xlu0 %v257, 98
    %v273 = vpop.permute.xlu0 %272
    %274 = vrot.lane.b32.xlu0 %v258, 98
    %v275 = vpop.permute.xlu0 %274
    %276 = vrot.lane.b32.xlu0 %v259, 98
    %v277 = vpop.permute.xlu0 %276
    %278 = vrot.lane.b32.xlu0 %v260, 98
    %v279 = vpop.permute.xlu0 %278
    %280 = vrot.lane.b32.xlu0 %v261, 98
    %v281 = vpop.permute.xlu0 %280
    %282 = vrot.lane.b32.xlu0 %v262, 98
    %v283 = vpop.permute.xlu0 %282
    %vm284 = vcmask 801792
    %v285 = vsel %vm284, %v271, %v273
    %v286 = vsel %vm284, %v273, %v275
    %v287 = vsel %vm284, %v275, %v277
    %v288 = vsel %vm284, %v277, %v279
    %v289 = vsel %vm284, %v279, %v281
    %v290 = vsel %vm284, %v281, %v283
    %v297 = vadd.f32 %v246, %v285
    %v298 = vadd.f32 %v247, %v286
    %v299 = vadd.f32 %v248, %v287
    %v300 = vadd.f32 %v249, %v288
    %v301 = vadd.f32 %v250, %v289
    %v302 = vadd.f32 %v251, %v290
    %303 = vset.pattern.permute.xlu0 6
    %304 = vperm.xlu0 %303, %v30
    %v305 = vpop.permute.xlu0 %304
    %v307 = vmul.f32 %v23, %v305
    %v308 = vmul.f32 %v24, %v305
    %v309 = vmul.f32 %v25, %v305
    %v310 = vmul.f32 %v26, %v305
    %v311 = vmul.f32 %v27, %v305
    %v312 = vmul.f32 %v28, %v305
    %v313 = vmul.f32 %v29, %v305
    %321 = vrot.lane.b32.xlu0 %v307, 72
    %v322 = vpop.permute.xlu0 %321
    %323 = vrot.lane.b32.xlu0 %v308, 72
    %v324 = vpop.permute.xlu0 %323
    %325 = vrot.lane.b32.xlu0 %v309, 72
    %v326 = vpop.permute.xlu0 %325
    %327 = vrot.lane.b32.xlu0 %v310, 72
    %v328 = vpop.permute.xlu0 %327
    %329 = vrot.lane.b32.xlu0 %v311, 72
    %v330 = vpop.permute.xlu0 %329
    %331 = vrot.lane.b32.xlu0 %v312, 72
    %v332 = vpop.permute.xlu0 %331
    %333 = vrot.lane.b32.xlu0 %v313, 72
    %v334 = vpop.permute.xlu0 %333
    %vm335 = vcmask 588800
    %v336 = vsel %vm335, %v322, %v324
    %v337 = vsel %vm335, %v324, %v326
    %v338 = vsel %vm335, %v326, %v328
    %v339 = vsel %vm335, %v328, %v330
    %v340 = vsel %vm335, %v330, %v332
    %v341 = vsel %vm335, %v332, %v334
    %v348 = vadd.f32 %v297, %v336
    %v349 = vadd.f32 %v298, %v337
    %v350 = vadd.f32 %v299, %v338
    %v351 = vadd.f32 %v300, %v339
    %v352 = vadd.f32 %v301, %v340
    %v353 = vadd.f32 %v302, %v341
    %354 = vset.pattern.permute.xlu0 7
    %355 = vperm.xlu0 %354, %v30
    %v356 = vpop.permute.xlu0 %355
    %v358 = vmul.f32 %v23, %v356
    %v359 = vmul.f32 %v24, %v356
    %v360 = vmul.f32 %v25, %v356
    %v361 = vmul.f32 %v26, %v356
    %v362 = vmul.f32 %v27, %v356
    %v363 = vmul.f32 %v28, %v356
    %v364 = vmul.f32 %v29, %v356
    %372 = vrot.lane.b32.xlu0 %v358, 71
    %v373 = vpop.permute.xlu0 %372
    %374 = vrot.lane.b32.xlu0 %v359, 71
    %v375 = vpop.permute.xlu0 %374
    %376 = vrot.lane.b32.xlu0 %v360, 71
    %v377 = vpop.permute.xlu0 %376
    %378 = vrot.lane.b32.xlu0 %v361, 71
    %v379 = vpop.permute.xlu0 %378
    %380 = vrot.lane.b32.xlu0 %v362, 71
    %v381 = vpop.permute.xlu0 %380
    %382 = vrot.lane.b32.xlu0 %v363, 71
    %v383 = vpop.permute.xlu0 %382
    %384 = vrot.lane.b32.xlu0 %v364, 71
    %v385 = vpop.permute.xlu0 %384
    %vm386 = vcmask 580608
    %v387 = vsel %vm386, %v373, %v375
    %v388 = vsel %vm386, %v375, %v377
    %v389 = vsel %vm386, %v377, %v379
    %v390 = vsel %vm386, %v379, %v381
    %v391 = vsel %vm386, %v381, %v383
    %v392 = vsel %vm386, %v383, %v385
    %v399 = vadd.f32 %v348, %v387
    %v400 = vadd.f32 %v349, %v388
    %v401 = vadd.f32 %v350, %v389
    %v402 = vadd.f32 %v351, %v390
    %v403 = vadd.f32 %v352, %v391
    %v404 = vadd.f32 %v353, %v392
    %405 = vset.pattern.permute.xlu0 8
    %406 = vperm.xlu0 %405, %v30
    %v407 = vpop.permute.xlu0 %406
    %v409 = vmul.f32 %v23, %v407
    %v410 = vmul.f32 %v24, %v407
    %v411 = vmul.f32 %v25, %v407
    %v412 = vmul.f32 %v26, %v407
    %v413 = vmul.f32 %v27, %v407
    %v414 = vmul.f32 %v28, %v407
    %v415 = vmul.f32 %v29, %v407
    %423 = vrot.lane.b32.xlu0 %v409, 70
    %v424 = vpop.permute.xlu0 %423
    %425 = vrot.lane.b32.xlu0 %v410, 70
    %v426 = vpop.permute.xlu0 %425
    %427 = vrot.lane.b32.xlu0 %v411, 70
    %v428 = vpop.permute.xlu0 %427
    %429 = vrot.lane.b32.xlu0 %v412, 70
    %v430 = vpop.permute.xlu0 %429
    %431 = vrot.lane.b32.xlu0 %v413, 70
    %v432 = vpop.permute.xlu0 %431
    %433 = vrot.lane.b32.xlu0 %v414, 70
    %v434 = vpop.permute.xlu0 %433
    %435 = vrot.lane.b32.xlu0 %v415, 70
    %v436 = vpop.permute.xlu0 %435
    %vm437 = vcmask 572416
    %v438 = vsel %vm437, %v424, %v426
    %v439 = vsel %vm437, %v426, %v428
    %v440 = vsel %vm437, %v428, %v430
    %v441 = vsel %vm437, %v430, %v432
    %v442 = vsel %vm437, %v432, %v434
    %v443 = vsel %vm437, %v434, %v436
    %v450 = vadd.f32 %v399, %v438
    %v451 = vadd.f32 %v400, %v439
    %v452 = vadd.f32 %v401, %v440
    %v453 = vadd.f32 %v402, %v441
    %v454 = vadd.f32 %v403, %v442
    %v455 = vadd.f32 %v404, %v443
    %v456 = vld [vmem:[%s2] sm:$0xff]
    %458 = vset.pattern.permute.xlu0 0
    %459 = vperm.xlu0 %458, %v456
    %v460 = vpop.permute.xlu0 %459
    %v462 = vadd.f32 %v450, %v460
    %v463 = vadd.f32 %v451, %v460
    %v464 = vadd.f32 %v452, %v460
    %v465 = vadd.f32 %v453, %v460
    %v466 = vadd.f32 %v454, %v460
    %v467 = vadd.f32 %v455, %v460
    %468 = vst [vmem:[%s6] sm:$0xff] %v462
    %469 = vst [vmem:[%s6 + $0x8] sm:$0xff] %v463
    %470 = vst [vmem:[%s6 + $0x10] sm:$0xff] %v464
    %471 = vst [vmem:[%s6 + $0x18] sm:$0xff] %v465
    %472 = vst [vmem:[%s6 + $0x20] sm:$0xff] %v466
    %473 = vst [vmem:[%s6 + $0x28] sm:$0xff] %v467
    %v474 = vmax.f32 %v462, 0.0
    %v475 = vmax.f32 %v463, 0.0
    %v476 = vmax.f32 %v464, 0.0
    %v477 = vmax.f32 %v465, 0.0
    %v478 = vmax.f32 %v466, 0.0
    %v479 = vmax.f32 %v467, 0.0
    %v480 = vld [vmem:[%s3] sm:$0xff]
    %v481 = vld [vmem:[%s3 + $0x8] sm:$0xff]
    %v482 = vld [vmem:[%s3 + $0x10] sm:$0xff]
    %v483 = vld [vmem:[%s3 + $0x18] sm:$0xff]
    %v484 = vld [vmem:[%s3 + $0x20] sm:$0xff]
    %v485 = vld [vmem:[%s3 + $0x28] sm:$0xff]
    %v486 = vld [vmem:[%s3 + $0x30] sm:$0x3]
    %v487 = vld [vmem:[%s3 + $0x38] sm:$0x3]
    %v488 = vld [vmem:[%s3 + $0x40] sm:$0x3]
    %v489 = vld [vmem:[%s3 + $0x48] sm:$0x3]
    %v490 = vld [vmem:[%s3 + $0x50] sm:$0x3]
    %v491 = vld [vmem:[%s3 + $0x58] sm:$0x3]
    %s492 = scalar_lea.vmem %s3, 96
    %v493 = vld [vmem:[%s492] sm:$0xff]
    %v494 = vld [vmem:[%s492 + $0x8] sm:$0xff]
    %v495 = vld [vmem:[%s492 + $0x10] sm:$0xff]
    %v496 = vld [vmem:[%s492 + $0x18] sm:$0xff]
    %v497 = vld [vmem:[%s492 + $0x20] sm:$0xff]
    %v498 = vld [vmem:[%s492 + $0x28] sm:$0xff]
    %v499 = vld [vmem:[%s492 + $0x30] sm:$0x3]
    %v500 = vld [vmem:[%s492 + $0x38] sm:$0x3]
    %v501 = vld [vmem:[%s492 + $0x40] sm:$0x3]
    %v502 = vld [vmem:[%s492 + $0x48] sm:$0x3]
    %v503 = vld [vmem:[%s492 + $0x50] sm:$0x3]
    %v504 = vld [vmem:[%s492 + $0x58] sm:$0x3]
    %v511 = vrot.slane %v474, 2
    %v512 = vrot.slane %v475, 2
    %v513 = vrot.slane %v476, 2
    %v514 = vrot.slane %v477, 2
    %v515 = vrot.slane %v478, 2
    %v516 = vrot.slane %v479, 2
    %523 = vmatprep.subr.mxu0 %v494
    %524 = vmatpush1.xpose.msra.mxu0 %v493
    %525 = vmatprep.subr.mxu0 %v500
    %526 = vmatpush1.xpose.msra.mxu0 %v499
    %527 = vmatprep.subr.mxu0 0.0
    %528 = vmatpush1.xpose.msra.mxu0 0.0
    %529 = vmatprep.subr.mxu0 0.0
    %530 = vmatpush1.xpose.msra.mxu0 0.0
    %531 = vmatprep.subr.mxu0 0.0
    %532 = vmatpush1.xpose.msra.mxu0 0.0
    %533 = vmatprep.subr.mxu0 0.0
    %534 = vmatpush1.xpose.msra.mxu0 0.0
    %535 = vmatprep.subr.mxu0 0.0
    %536 = vmatpush1.xpose.msra.mxu0 0.0
    %537 = vmatprep.subr.mxu0 0.0
    %538 = vmatpush1.xpose.msra.mxu0 0.0
    %539 = vmatprep.subr.mxu0 0.0
    %540 = vmatpush1.xpose.msra.mxu0 0.0
    %541 = vmatprep.subr.mxu0 0.0
    %542 = vmatpush1.xpose.msra.mxu0 0.0
    %543 = vmatprep.subr.mxu0 0.0
    %544 = vmatpush1.xpose.msra.mxu0 0.0
    %545 = vmatprep.subr.mxu0 0.0
    %546 = vmatpush1.xpose.msra.mxu0 0.0
    %547 = vmatprep.subr.mxu0 0.0
    %548 = vmatpush1.xpose.msra.mxu0 0.0
    %549 = vmatprep.subr.mxu0 0.0
    %550 = vmatpush1.xpose.msra.mxu0 0.0
    %551 = vmatprep.subr.mxu0 0.0
    %552 = vmatpush1.xpose.msra.mxu0 0.0
    %553 = vmatprep.subr.mxu0 0.0
    %554 = vmatpush1.xpose.msra.mxu0 0.0
    %555 = vmatprep.subr.mxu0 0.0
    %556 = vmatpush1.xpose.msra.mxu0 0.0
    %557 = vmatprep.subr.mxu0 0.0
    %558 = vmatpush1.xpose.msra.mxu0 0.0
    %559 = vmatprep.subr.mxu0 0.0
    %560 = vmatpush1.xpose.msra.mxu0 0.0
    %561 = vmatprep.subr.mxu0 0.0
    %562 = vmatpush1.xpose.msra.mxu0 0.0
    %563 = vmatprep.subr.mxu0 0.0
    %564 = vmatpush1.xpose.msra.mxu0 0.0
    %565 = vmatprep.subr.mxu0 0.0
    %566 = vmatpush1.xpose.msra.mxu0 0.0
    %567 = vmatprep.subr.mxu0 0.0
    %568 = vmatpush1.xpose.msra.mxu0 0.0
    %569 = vmatprep.subr.mxu0 0.0
    %570 = vmatpush1.xpose.msra.mxu0 0.0
    %571 = vmatprep.subr.mxu0 0.0
    %572 = vmatpush1.xpose.msra.mxu0 0.0
    %573 = vmatprep.subr.mxu0 0.0
    %574 = vmatpush1.xpose.msra.mxu0 0.0
    %575 = vmatprep.subr.mxu0 0.0
    %576 = vmatpush1.xpose.msra.mxu0 0.0
    %577 = vmatprep.subr.mxu0 0.0
    %578 = vmatpush1.xpose.msra.mxu0 0.0
    %579 = vmatprep.subr.mxu0 0.0
    %580 = vmatpush1.xpose.msra.mxu0 0.0
    %581 = vmatprep.subr.mxu0 0.0
    %582 = vmatpush1.xpose.msra.mxu0 0.0
    %583 = vmatprep.subr.mxu0 0.0
    %584 = vmatpush1.xpose.msra.mxu0 0.0
    %585 = vmatprep.subr.mxu0 0.0
    %586 = vmatpush1.xpose.msra.mxu0 0.0
    %587 = vmatprep.mubr.f32.mxu0 %v512
    %588 = vmatmul.mubr.f32.gmra.mrb[0].mxu0 %v511
    %v589 = vpop.f32.mrb[0].mxu0
    %v590 = vadd.f32 0.0, %v589
    %v591 = vpop.f32.mrb[0].mxu0
    %592 = vdwg.mxu0
    %593 = vmatprep.subr.mxu0 %v496
    %594 = vmatpush1.xpose.msra.mxu0 %v495
    %595 = vmatprep.subr.mxu0 %v502
    %596 = vmatpush1.xpose.msra.mxu0 %v501
    %597 = vmatprep.subr.mxu0 0.0
    %598 = vmatpush1.xpose.msra.mxu0 0.0
    %599 = vmatprep.subr.mxu0 0.0
    %600 = vmatpush1.xpose.msra.mxu0 0.0
    %601 = vmatprep.subr.mxu0 0.0
    %602 = vmatpush1.xpose.msra.mxu0 0.0
    %603 = vmatprep.subr.mxu0 0.0
    %604 = vmatpush1.xpose.msra.mxu0 0.0
    %605 = vmatprep.subr.mxu0 0.0
    %606 = vmatpush1.xpose.msra.mxu0 0.0
    %607 = vmatprep.subr.mxu0 0.0
    %608 = vmatpush1.xpose.msra.mxu0 0.0
    %609 = vmatprep.subr.mxu0 0.0
    %610 = vmatpush1.xpose.msra.mxu0 0.0
    %611 = vmatprep.subr.mxu0 0.0
    %612 = vmatpush1.xpose.msra.mxu0 0.0
    %613 = vmatprep.subr.mxu0 0.0
    %614 = vmatpush1.xpose.msra.mxu0 0.0
    %615 = vmatprep.subr.mxu0 0.0
    %616 = vmatpush1.xpose.msra.mxu0 0.0
    %617 = vmatprep.subr.mxu0 0.0
    %618 = vmatpush1.xpose.msra.mxu0 0.0
    %619 = vmatprep.subr.mxu0 0.0
    %620 = vmatpush1.xpose.msra.mxu0 0.0
    %621 = vmatprep.subr.mxu0 0.0
    %622 = vmatpush1.xpose.msra.mxu0 0.0
    %623 = vmatprep.subr.mxu0 0.0
    %624 = vmatpush1.xpose.msra.mxu0 0.0
    %625 = vmatprep.subr.mxu0 0.0
    %626 = vmatpush1.xpose.msra.mxu0 0.0
    %627 = vmatprep.subr.mxu0 0.0
    %628 = vmatpush1.xpose.msra.mxu0 0.0
    %629 = vmatprep.subr.mxu0 0.0
    %630 = vmatpush1.xpose.msra.mxu0 0.0
    %631 = vmatprep.subr.mxu0 0.0
    %632 = vmatpush1.xpose.msra.mxu0 0.0
    %633 = vmatprep.subr.mxu0 0.0
    %634 = vmatpush1.xpose.msra.mxu0 0.0
    %635 = vmatprep.subr.mxu0 0.0
    %636 = vmatpush1.xpose.msra.mxu0 0.0
    %637 = vmatprep.subr.mxu0 0.0
    %638 = vmatpush1.xpose.msra.mxu0 0.0
    %639 = vmatprep.subr.mxu0 0.0
    %640 = vmatpush1.xpose.msra.mxu0 0.0
    %641 = vmatprep.subr.mxu0 0.0
    %642 = vmatpush1.xpose.msra.mxu0 0.0
    %643 = vmatprep.subr.mxu0 0.0
    %644 = vmatpush1.xpose.msra.mxu0 0.0
    %645 = vmatprep.subr.mxu0 0.0
    %646 = vmatpush1.xpose.msra.mxu0 0.0
    %647 = vmatprep.subr.mxu0 0.0
    %648 = vmatpush1.xpose.msra.mxu0 0.0
    %649 = vmatprep.subr.mxu0 0.0
    %650 = vmatpush1.xpose.msra.mxu0 0.0
    %651 = vmatprep.subr.mxu0 0.0
    %652 = vmatpush1.xpose.msra.mxu0 0.0
    %653 = vmatprep.subr.mxu0 0.0
    %654 = vmatpush1.xpose.msra.mxu0 0.0
    %655 = vmatprep.subr.mxu0 0.0
    %656 = vmatpush1.xpose.msra.mxu0 0.0
    %657 = vmatprep.mubr.f32.mxu0 %v514
    %658 = vmatmul.mubr.f32.gmra.mrb[0].mxu0 %v513
    %v659 = vpop.f32.mrb[0].mxu0
    %v660 = vadd.f32 %v590, %v659
    %v661 = vpop.f32.mrb[0].mxu0
    %662 = vdwg.mxu0
    %663 = vmatprep.subr.mxu0 %v498
    %664 = vmatpush1.xpose.msra.mxu0 %v497
    %665 = vmatprep.subr.mxu0 %v504
    %666 = vmatpush1.xpose.msra.mxu0 %v503
    %667 = vmatprep.subr.mxu0 0.0
    %668 = vmatpush1.xpose.msra.mxu0 0.0
    %669 = vmatprep.subr.mxu0 0.0
    %670 = vmatpush1.xpose.msra.mxu0 0.0
    %671 = vmatprep.subr.mxu0 0.0
    %672 = vmatpush1.xpose.msra.mxu0 0.0
    %673 = vmatprep.subr.mxu0 0.0
    %674 = vmatpush1.xpose.msra.mxu0 0.0
    %675 = vmatprep.subr.mxu0 0.0
    %676 = vmatpush1.xpose.msra.mxu0 0.0
    %677 = vmatprep.subr.mxu0 0.0
    %678 = vmatpush1.xpose.msra.mxu0 0.0
    %679 = vmatprep.subr.mxu0 0.0
    %680 = vmatpush1.xpose.msra.mxu0 0.0
    %681 = vmatprep.subr.mxu0 0.0
    %682 = vmatpush1.xpose.msra.mxu0 0.0
    %683 = vmatprep.subr.mxu0 0.0
    %684 = vmatpush1.xpose.msra.mxu0 0.0
    %685 = vmatprep.subr.mxu0 0.0
    %686 = vmatpush1.xpose.msra.mxu0 0.0
    %687 = vmatprep.subr.mxu0 0.0
    %688 = vmatpush1.xpose.msra.mxu0 0.0
    %689 = vmatprep.subr.mxu0 0.0
    %690 = vmatpush1.xpose.msra.mxu0 0.0
    %691 = vmatprep.subr.mxu0 0.0
    %692 = vmatpush1.xpose.msra.mxu0 0.0
    %693 = vmatprep.subr.mxu0 0.0
    %694 = vmatpush1.xpose.msra.mxu0 0.0
    %695 = vmatprep.subr.mxu0 0.0
    %696 = vmatpush1.xpose.msra.mxu0 0.0
    %697 = vmatprep.subr.mxu0 0.0
    %698 = vmatpush1.xpose.msra.mxu0 0.0
    %699 = vmatprep.subr.mxu0 0.0
    %700 = vmatpush1.xpose.msra.mxu0 0.0
    %701 = vmatprep.subr.mxu0 0.0
    %702 = vmatpush1.xpose.msra.mxu0 0.0
    %703 = vmatprep.subr.mxu0 0.0
    %704 = vmatpush1.xpose.msra.mxu0 0.0
    %705 = vmatprep.subr.mxu0 0.0
    %706 = vmatpush1.xpose.msra.mxu0 0.0
    %707 = vmatprep.subr.mxu0 0.0
    %708 = vmatpush1.xpose.msra.mxu0 0.0
    %709 = vmatprep.subr.mxu0 0.0
    %710 = vmatpush1.xpose.msra.mxu0 0.0
    %711 = vmatprep.subr.mxu0 0.0
    %712 = vmatpush1.xpose.msra.mxu0 0.0
    %713 = vmatprep.subr.mxu0 0.0
    %714 = vmatpush1.xpose.msra.mxu0 0.0
    %715 = vmatprep.subr.mxu0 0.0
    %716 = vmatpush1.xpose.msra.mxu0 0.0
    %717 = vmatprep.subr.mxu0 0.0
    %718 = vmatpush1.xpose.msra.mxu0 0.0
    %719 = vmatprep.subr.mxu0 0.0
    %720 = vmatpush1.xpose.msra.mxu0 0.0
    %721 = vmatprep.subr.mxu0 0.0
    %722 = vmatpush1.xpose.msra.mxu0 0.0
    %723 = vmatprep.subr.mxu0 0.0
    %724 = vmatpush1.xpose.msra.mxu0 0.0
    %725 = vmatprep.subr.mxu0 0.0
    %726 = vmatpush1.xpose.msra.mxu0 0.0
    %727 = vmatprep.mubr.f32.mxu0 %v516
    %728 = vmatmul.mubr.f32.gmra.mrb[0].mxu0 %v515
    %v729 = vpop.f32.mrb[0].mxu0
    %v730 = vadd.f32 %v660, %v729
    %v731 = vpop.f32.mrb[0].mxu0
    %732 = vdwg.mxu0
    %733 = vmatprep.subr.mxu0 %v481
    %734 = vmatpush1.xpose.msra.mxu0 %v480
    %735 = vmatprep.subr.mxu0 %v487
    %736 = vmatpush1.xpose.msra.mxu0 %v486
    %737 = vmatprep.subr.mxu0 0.0
    %738 = vmatpush1.xpose.msra.mxu0 0.0
    %739 = vmatprep.subr.mxu0 0.0
    %740 = vmatpush1.xpose.msra.mxu0 0.0
    %741 = vmatprep.subr.mxu0 0.0
    %742 = vmatpush1.xpose.msra.mxu0 0.0
    %743 = vmatprep.subr.mxu0 0.0
    %744 = vmatpush1.xpose.msra.mxu0 0.0
    %745 = vmatprep.subr.mxu0 0.0
    %746 = vmatpush1.xpose.msra.mxu0 0.0
    %747 = vmatprep.subr.mxu0 0.0
    %748 = vmatpush1.xpose.msra.mxu0 0.0
    %749 = vmatprep.subr.mxu0 0.0
    %750 = vmatpush1.xpose.msra.mxu0 0.0
    %751 = vmatprep.subr.mxu0 0.0
    %752 = vmatpush1.xpose.msra.mxu0 0.0
    %753 = vmatprep.subr.mxu0 0.0
    %754 = vmatpush1.xpose.msra.mxu0 0.0
    %755 = vmatprep.subr.mxu0 0.0
    %756 = vmatpush1.xpose.msra.mxu0 0.0
    %757 = vmatprep.subr.mxu0 0.0
    %758 = vmatpush1.xpose.msra.mxu0 0.0
    %759 = vmatprep.subr.mxu0 0.0
    %760 = vmatpush1.xpose.msra.mxu0 0.0
    %761 = vmatprep.subr.mxu0 0.0
    %762 = vmatpush1.xpose.msra.mxu0 0.0
    %763 = vmatprep.subr.mxu0 0.0
    %764 = vmatpush1.xpose.msra.mxu0 0.0
    %765 = vmatprep.subr.mxu0 0.0
    %766 = vmatpush1.xpose.msra.mxu0 0.0
    %767 = vmatprep.subr.mxu0 0.0
    %768 = vmatpush1.xpose.msra.mxu0 0.0
    %769 = vmatprep.subr.mxu0 0.0
    %770 = vmatpush1.xpose.msra.mxu0 0.0
    %771 = vmatprep.subr.mxu0 0.0
    %772 = vmatpush1.xpose.msra.mxu0 0.0
    %773 = vmatprep.subr.mxu0 0.0
    %774 = vmatpush1.xpose.msra.mxu0 0.0
    %775 = vmatprep.subr.mxu0 0.0
    %776 = vmatpush1.xpose.msra.mxu0 0.0
    %777 = vmatprep.subr.mxu0 0.0
    %778 = vmatpush1.xpose.msra.mxu0 0.0
    %779 = vmatprep.subr.mxu0 0.0
    %780 = vmatpush1.xpose.msra.mxu0 0.0
    %781 = vmatprep.subr.mxu0 0.0
    %782 = vmatpush1.xpose.msra.mxu0 0.0
    %783 = vmatprep.subr.mxu0 0.0
    %784 = vmatpush1.xpose.msra.mxu0 0.0
    %785 = vmatprep.subr.mxu0 0.0
    %786 = vmatpush1.xpose.msra.mxu0 0.0
    %787 = vmatprep.subr.mxu0 0.0
    %788 = vmatpush1.xpose.msra.mxu0 0.0
    %789 = vmatprep.subr.mxu0 0.0
    %790 = vmatpush1.xpose.msra.mxu0 0.0
    %791 = vmatprep.subr.mxu0 0.0
    %792 = vmatpush1.xpose.msra.mxu0 0.0
    %793 = vmatprep.subr.mxu0 0.0
    %794 = vmatpush1.xpose.msra.mxu0 0.0
    %795 = vmatprep.subr.mxu0 0.0
    %796 = vmatpush1.xpose.msra.mxu0 0.0
    %797 = vmatprep.mubr.f32.mxu0 %v475
    %798 = vmatmul.mubr.f32.gmra.mrb[0].mxu0 %v474
    %v799 = vpop.f32.mrb[0].mxu0
    %v800 = vadd.f32 %v730, %v799
    %v801 = vpop.f32.mrb[0].mxu0
    %802 = vdwg.mxu0
    %803 = vmatprep.subr.mxu0 %v483
    %804 = vmatpush1.xpose.msra.mxu0 %v482
    %805 = vmatprep.subr.mxu0 %v489
    %806 = vmatpush1.xpose.msra.mxu0 %v488
    %807 = vmatprep.subr.mxu0 0.0
    %808 = vmatpush1.xpose.msra.mxu0 0.0
    %809 = vmatprep.subr.mxu0 0.0
    %810 = vmatpush1.xpose.msra.mxu0 0.0
    %811 = vmatprep.subr.mxu0 0.0
    %812 = vmatpush1.xpose.msra.mxu0 0.0
    %813 = vmatprep.subr.mxu0 0.0
    %814 = vmatpush1.xpose.msra.mxu0 0.0
    %815 = vmatprep.subr.mxu0 0.0
    %816 = vmatpush1.xpose.msra.mxu0 0.0
    %817 = vmatprep.subr.mxu0 0.0
    %818 = vmatpush1.xpose.msra.mxu0 0.0
    %819 = vmatprep.subr.mxu0 0.0
    %820 = vmatpush1.xpose.msra.mxu0 0.0
    %821 = vmatprep.subr.mxu0 0.0
    %822 = vmatpush1.xpose.msra.mxu0 0.0
    %823 = vmatprep.subr.mxu0 0.0
    %824 = vmatpush1.xpose.msra.mxu0 0.0
    %825 = vmatprep.subr.mxu0 0.0
    %826 = vmatpush1.xpose.msra.mxu0 0.0
    %827 = vmatprep.subr.mxu0 0.0
    %828 = vmatpush1.xpose.msra.mxu0 0.0
    %829 = vmatprep.subr.mxu0 0.0
    %830 = vmatpush1.xpose.msra.mxu0 0.0
    %831 = vmatprep.subr.mxu0 0.0
    %832 = vmatpush1.xpose.msra.mxu0 0.0
    %833 = vmatprep.subr.mxu0 0.0
    %834 = vmatpush1.xpose.msra.mxu0 0.0
    %835 = vmatprep.subr.mxu0 0.0
    %836 = vmatpush1.xpose.msra.mxu0 0.0
    %837 = vmatprep.subr.mxu0 0.0
    %838 = vmatpush1.xpose.msra.mxu0 0.0
    %839 = vmatprep.subr.mxu0 0.0
    %840 = vmatpush1.xpose.msra.mxu0 0.0
    %841 = vmatprep.subr.mxu0 0.0
    %842 = vmatpush1.xpose.msra.mxu0 0.0
    %843 = vmatprep.subr.mxu0 0.0
    %844 = vmatpush1.xpose.msra.mxu0 0.0
    %845 = vmatprep.subr.mxu0 0.0
    %846 = vmatpush1.xpose.msra.mxu0 0.0
    %847 = vmatprep.subr.mxu0 0.0
    %848 = vmatpush1.xpose.msra.mxu0 0.0
    %849 = vmatprep.subr.mxu0 0.0
    %850 = vmatpush1.xpose.msra.mxu0 0.0
    %851 = vmatprep.subr.mxu0 0.0
    %852 = vmatpush1.xpose.msra.mxu0 0.0
    %853 = vmatprep.subr.mxu0 0.0
    %854 = vmatpush1.xpose.msra.mxu0 0.0
    %855 = vmatprep.subr.mxu0 0.0
    %856 = vmatpush1.xpose.msra.mxu0 0.0
    %857 = vmatprep.subr.mxu0 0.0
    %858 = vmatpush1.xpose.msra.mxu0 0.0
    %859 = vmatprep.subr.mxu0 0.0
    %860 = vmatpush1.xpose.msra.mxu0 0.0
    %861 = vmatprep.subr.mxu0 0.0
    %862 = vmatpush1.xpose.msra.mxu0 0.0
    %863 = vmatprep.subr.mxu0 0.0
    %864 = vmatpush1.xpose.msra.mxu0 0.0
    %865 = vmatprep.subr.mxu0 0.0
    %866 = vmatpush1.xpose.msra.mxu0 0.0
    %867 = vmatprep.mubr.f32.mxu0 %v477
    %868 = vmatmul.mubr.f32.gmra.mrb[0].mxu0 %v476
    %v869 = vpop.f32.mrb[0].mxu0
    %v870 = vadd.f32 %v800, %v869
    %v871 = vpop.f32.mrb[0].mxu0
    %872 = vdwg.mxu0
    %873 = vmatprep.subr.mxu0 %v485
    %874 = vmatpush1.xpose.msra.mxu0 %v484
    %875 = vmatprep.subr.mxu0 %v491
    %876 = vmatpush1.xpose.msra.mxu0 %v490
    %877 = vmatprep.subr.mxu0 0.0
    %878 = vmatpush1.xpose.msra.mxu0 0.0
    %879 = vmatprep.subr.mxu0 0.0
    %880 = vmatpush1.xpose.msra.mxu0 0.0
    %881 = vmatprep.subr.mxu0 0.0
    %882 = vmatpush1.xpose.msra.mxu0 0.0
    %883 = vmatprep.subr.mxu0 0.0
    %884 = vmatpush1.xpose.msra.mxu0 0.0
    %885 = vmatprep.subr.mxu0 0.0
    %886 = vmatpush1.xpose.msra.mxu0 0.0
    %887 = vmatprep.subr.mxu0 0.0
    %888 = vmatpush1.xpose.msra.mxu0 0.0
    %889 = vmatprep.subr.mxu0 0.0
    %890 = vmatpush1.xpose.msra.mxu0 0.0
    %891 = vmatprep.subr.mxu0 0.0
    %892 = vmatpush1.xpose.msra.mxu0 0.0
    %893 = vmatprep.subr.mxu0 0.0
    %894 = vmatpush1.xpose.msra.mxu0 0.0
    %895 = vmatprep.subr.mxu0 0.0
    %896 = vmatpush1.xpose.msra.mxu0 0.0
    %897 = vmatprep.subr.mxu0 0.0
    %898 = vmatpush1.xpose.msra.mxu0 0.0
    %899 = vmatprep.subr.mxu0 0.0
    %900 = vmatpush1.xpose.msra.mxu0 0.0
    %901 = vmatprep.subr.mxu0 0.0
    %902 = vmatpush1.xpose.msra.mxu0 0.0
    %903 = vmatprep.subr.mxu0 0.0
    %904 = vmatpush1.xpose.msra.mxu0 0.0
    %905 = vmatprep.subr.mxu0 0.0
    %906 = vmatpush1.xpose.msra.mxu0 0.0
    %907 = vmatprep.subr.mxu0 0.0
    %908 = vmatpush1.xpose.msra.mxu0 0.0
    %909 = vmatprep.subr.mxu0 0.0
    %910 = vmatpush1.xpose.msra.mxu0 0.0
    %911 = vmatprep.subr.mxu0 0.0
    %912 = vmatpush1.xpose.msra.mxu0 0.0
    %913 = vmatprep.subr.mxu0 0.0
    %914 = vmatpush1.xpose.msra.mxu0 0.0
    %915 = vmatprep.subr.mxu0 0.0
    %916 = vmatpush1.xpose.msra.mxu0 0.0
    %917 = vmatprep.subr.mxu0 0.0
    %918 = vmatpush1.xpose.msra.mxu0 0.0
    %919 = vmatprep.subr.mxu0 0.0
    %920 = vmatpush1.xpose.msra.mxu0 0.0
    %921 = vmatprep.subr.mxu0 0.0
    %922 = vmatpush1.xpose.msra.mxu0 0.0
    %923 = vmatprep.subr.mxu0 0.0
    %924 = vmatpush1.xpose.msra.mxu0 0.0
    %925 = vmatprep.subr.mxu0 0.0
    %926 = vmatpush1.xpose.msra.mxu0 0.0
    %927 = vmatprep.subr.mxu0 0.0
    %928 = vmatpush1.xpose.msra.mxu0 0.0
    %929 = vmatprep.subr.mxu0 0.0
    %930 = vmatpush1.xpose.msra.mxu0 0.0
    %931 = vmatprep.subr.mxu0 0.0
    %932 = vmatpush1.xpose.msra.mxu0 0.0
    %933 = vmatprep.subr.mxu0 0.0
    %934 = vmatpush1.xpose.msra.mxu0 0.0
    %935 = vmatprep.subr.mxu0 0.0
    %936 = vmatpush1.xpose.msra.mxu0 0.0
    %937 = vmatprep.mubr.f32.mxu0 %v479
    %938 = vmatmul.mubr.f32.gmra.mrb[0].mxu0 %v478
    %v939 = vpop.f32.mrb[0].mxu0
    %v940 = vadd.f32 %v870, %v939
    %v941 = vpop.f32.mrb[0].mxu0
    %942 = vdwg.mxu0
    %s943 = scalar_lea.vmem %s3, 192
    %v944 = vld [vmem:[%s943] sm:$0xff]
    %v945 = vld [vmem:[%s943 + $0x8] sm:$0xff]
    %v946 = vld [vmem:[%s943 + $0x10] sm:$0xff]
    %v947 = vld [vmem:[%s943 + $0x18] sm:$0xff]
    %v948 = vld [vmem:[%s943 + $0x20] sm:$0xff]
    %v949 = vld [vmem:[%s943 + $0x28] sm:$0xff]
    %v950 = vld [vmem:[%s943 + $0x30] sm:$0x3]
    %v951 = vld [vmem:[%s943 + $0x38] sm:$0x3]
    %v952 = vld [vmem:[%s943 + $0x40] sm:$0x3]
    %v953 = vld [vmem:[%s943 + $0x48] sm:$0x3]
    %v954 = vld [vmem:[%s943 + $0x50] sm:$0x3]
    %v955 = vld [vmem:[%s943 + $0x58] sm:$0x3]
    %v956 = vrot.slane %v474, 4
    %v957 = vrot.slane %v475, 4
    %v958 = vrot.slane %v476, 4
    %v959 = vrot.slane %v477, 4
    %v960 = vrot.slane %v478, 4
    %v961 = vrot.slane %v479, 4
    %968 = vmatprep.subr.mxu0 %v945
    %969 = vmatpush1.xpose.msra.mxu0 %v944
    %970 = vmatprep.subr.mxu0 %v951
    %971 = vmatpush1.xpose.msra.mxu0 %v950
    %972 = vmatprep.subr.mxu0 0.0
    %973 = vmatpush1.xpose.msra.mxu0 0.0
    %974 = vmatprep.subr.mxu0 0.0
    %975 = vmatpush1.xpose.msra.mxu0 0.0
    %976 = vmatprep.subr.mxu0 0.0
    %977 = vmatpush1.xpose.msra.mxu0 0.0
    %978 = vmatprep.subr.mxu0 0.0
    %979 = vmatpush1.xpose.msra.mxu0 0.0
    %980 = vmatprep.subr.mxu0 0.0
    %981 = vmatpush1.xpose.msra.mxu0 0.0
    %982 = vmatprep.subr.mxu0 0.0
    %983 = vmatpush1.xpose.msra.mxu0 0.0
    %984 = vmatprep.subr.mxu0 0.0
    %985 = vmatpush1.xpose.msra.mxu0 0.0
    %986 = vmatprep.subr.mxu0 0.0
    %987 = vmatpush1.xpose.msra.mxu0 0.0
    %988 = vmatprep.subr.mxu0 0.0
    %989 = vmatpush1.xpose.msra.mxu0 0.0
    %990 = vmatprep.subr.mxu0 0.0
    %991 = vmatpush1.xpose.msra.mxu0 0.0
    %992 = vmatprep.subr.mxu0 0.0
    %993 = vmatpush1.xpose.msra.mxu0 0.0
    %994 = vmatprep.subr.mxu0 0.0
    %995 = vmatpush1.xpose.msra.mxu0 0.0
    %996 = vmatprep.subr.mxu0 0.0
    %997 = vmatpush1.xpose.msra.mxu0 0.0
    %998 = vmatprep.subr.mxu0 0.0
    %999 = vmatpush1.xpose.msra.mxu0 0.0
    %1000 = vmatprep.subr.mxu0 0.0
    %1001 = vmatpush1.xpose.msra.mxu0 0.0
    %1002 = vmatprep.subr.mxu0 0.0
    %1003 = vmatpush1.xpose.msra.mxu0 0.0
    %1004 = vmatprep.subr.mxu0 0.0
    %1005 = vmatpush1.xpose.msra.mxu0 0.0
    %1006 = vmatprep.subr.mxu0 0.0
    %1007 = vmatpush1.xpose.msra.mxu0 0.0
    %1008 = vmatprep.subr.mxu0 0.0
    %1009 = vmatpush1.xpose.msra.mxu0 0.0
    %1010 = vmatprep.subr.mxu0 0.0
    %1011 = vmatpush1.xpose.msra.mxu0 0.0
    %1012 = vmatprep.subr.mxu0 0.0
    %1013 = vmatpush1.xpose.msra.mxu0 0.0
    %1014 = vmatprep.subr.mxu0 0.0
    %1015 = vmatpush1.xpose.msra.mxu0 0.0
    %1016 = vmatprep.subr.mxu0 0.0
    %1017 = vmatpush1.xpose.msra.mxu0 0.0
    %1018 = vmatprep.subr.mxu0 0.0
    %1019 = vmatpush1.xpose.msra.mxu0 0.0
    %1020 = vmatprep.subr.mxu0 0.0
    %1021 = vmatpush1.xpose.msra.mxu0 0.0
    %1022 = vmatprep.subr.mxu0 0.0
    %1023 = vmatpush1.xpose.msra.mxu0 0.0
    %1024 = vmatprep.subr.mxu0 0.0
    %1025 = vmatpush1.xpose.msra.mxu0 0.0
    %1026 = vmatprep.subr.mxu0 0.0
    %1027 = vmatpush1.xpose.msra.mxu0 0.0
    %1028 = vmatprep.subr.mxu0 0.0
    %1029 = vmatpush1.xpose.msra.mxu0 0.0
    %1030 = vmatprep.subr.mxu0 0.0
    %1031 = vmatpush1.xpose.msra.mxu0 0.0
    %1032 = vmatprep.mubr.f32.mxu0 %v957
    %1033 = vmatmul.mubr.f32.gmra.mrb[0].mxu0 %v956
    %v1034 = vpop.f32.mrb[0].mxu0
    %v1035 = vadd.f32 0.0, %v1034
    %v1036 = vpop.f32.mrb[0].mxu0
    %1037 = vdwg.mxu0
    %1038 = vmatprep.subr.mxu0 %v947
    %1039 = vmatpush1.xpose.msra.mxu0 %v946
    %1040 = vmatprep.subr.mxu0 %v953
    %1041 = vmatpush1.xpose.msra.mxu0 %v952
    %1042 = vmatprep.subr.mxu0 0.0
    %1043 = vmatpush1.xpose.msra.mxu0 0.0
    %1044 = vmatprep.subr.mxu0 0.0
    %1045 = vmatpush1.xpose.msra.mxu0 0.0
    %1046 = vmatprep.subr.mxu0 0.0
    %1047 = vmatpush1.xpose.msra.mxu0 0.0
    %1048 = vmatprep.subr.mxu0 0.0
    %1049 = vmatpush1.xpose.msra.mxu0 0.0
    %1050 = vmatprep.subr.mxu0 0.0
    %1051 = vmatpush1.xpose.msra.mxu0 0.0
    %1052 = vmatprep.subr.mxu0 0.0
    %1053 = vmatpush1.xpose.msra.mxu0 0.0
    %1054 = vmatprep.subr.mxu0 0.0
    %1055 = vmatpush1.xpose.msra.mxu0 0.0
    %1056 = vmatprep.subr.mxu0 0.0
    %1057 = vmatpush1.xpose.msra.mxu0 0.0
    %1058 = vmatprep.subr.mxu0 0.0
    %1059 = vmatpush1.xpose.msra.mxu0 0.0
    %1060 = vmatprep.subr.mxu0 0.0
    %1061 = vmatpush1.xpose.msra.mxu0 0.0
    %1062 = vmatprep.subr.mxu0 0.0
    %1063 = vmatpush1.xpose.msra.mxu0 0.0
    %1064 = vmatprep.subr.mxu0 0.0
    %1065 = vmatpush1.xpose.msra.mxu0 0.0
    %1066 = vmatprep.subr.mxu0 0.0
    %1067 = vmatpush1.xpose.msra.mxu0 0.0
    %1068 = vmatprep.subr.mxu0 0.0
    %1069 = vmatpush1.xpose.msra.mxu0 0.0
    %1070 = vmatprep.subr.mxu0 0.0
    %1071 = vmatpush1.xpose.msra.mxu0 0.0
    %1072 = vmatprep.subr.mxu0 0.0
    %1073 = vmatpush1.xpose.msra.mxu0 0.0
    %1074 = vmatprep.subr.mxu0 0.0
    %1075 = vmatpush1.xpose.msra.mxu0 0.0
    %1076 = vmatprep.subr.mxu0 0.0
    %1077 = vmatpush1.xpose.msra.mxu0 0.0
    %1078 = vmatprep.subr.mxu0 0.0
    %1079 = vmatpush1.xpose.msra.mxu0 0.0
    %1080 = vmatprep.subr.mxu0 0.0
    %1081 = vmatpush1.xpose.msra.mxu0 0.0
    %1082 = vmatprep.subr.mxu0 0.0
    %1083 = vmatpush1.xpose.msra.mxu0 0.0
    %1084 = vmatprep.subr.mxu0 0.0
    %1085 = vmatpush1.xpose.msra.mxu0 0.0
    %1086 = vmatprep.subr.mxu0 0.0
    %1087 = vmatpush1.xpose.msra.mxu0 0.0
    %1088 = vmatprep.subr.mxu0 0.0
    %1089 = vmatpush1.xpose.msra.mxu0 0.0
    %1090 = vmatprep.subr.mxu0 0.0
    %1091 = vmatpush1.xpose.msra.mxu0 0.0
    %1092 = vmatprep.subr.mxu0 0.0
    %1093 = vmatpush1.xpose.msra.mxu0 0.0
    %1094 = vmatprep.subr.mxu0 0.0
    %1095 = vmatpush1.xpose.msra.mxu0 0.0
    %1096 = vmatprep.subr.mxu0 0.0
    %1097 = vmatpush1.xpose.msra.mxu0 0.0
    %1098 = vmatprep.subr.mxu0 0.0
    %1099 = vmatpush1.xpose.msra.mxu0 0.0
    %1100 = vmatprep.subr.mxu0 0.0
    %1101 = vmatpush1.xpose.msra.mxu0 0.0
    %1102 = vmatprep.mubr.f32.mxu0 %v959
    %1103 = vmatmul.mubr.f32.gmra.mrb[0].mxu0 %v958
    %v1104 = vpop.f32.mrb[0].mxu0
    %v1105 = vadd.f32 %v1035, %v1104
    %v1106 = vpop.f32.mrb[0].mxu0
    %1107 = vdwg.mxu0
    %1108 = vmatprep.subr.mxu0 %v949
    %1109 = vmatpush1.xpose.msra.mxu0 %v948
    %1110 = vmatprep.subr.mxu0 %v955
    %1111 = vmatpush1.xpose.msra.mxu0 %v954
    %1112 = vmatprep.subr.mxu0 0.0
    %1113 = vmatpush1.xpose.msra.mxu0 0.0
    %1114 = vmatprep.subr.mxu0 0.0
    %1115 = vmatpush1.xpose.msra.mxu0 0.0
    %1116 = vmatprep.subr.mxu0 0.0
    %1117 = vmatpush1.xpose.msra.mxu0 0.0
    %1118 = vmatprep.subr.mxu0 0.0
    %1119 = vmatpush1.xpose.msra.mxu0 0.0
    %1120 = vmatprep.subr.mxu0 0.0
    %1121 = vmatpush1.xpose.msra.mxu0 0.0
    %1122 = vmatprep.subr.mxu0 0.0
    %1123 = vmatpush1.xpose.msra.mxu0 0.0
    %1124 = vmatprep.subr.mxu0 0.0
    %1125 = vmatpush1.xpose.msra.mxu0 0.0
    %1126 = vmatprep.subr.mxu0 0.0
    %1127 = vmatpush1.xpose.msra.mxu0 0.0
    %1128 = vmatprep.subr.mxu0 0.0
    %1129 = vmatpush1.xpose.msra.mxu0 0.0
    %1130 = vmatprep.subr.mxu0 0.0
    %1131 = vmatpush1.xpose.msra.mxu0 0.0
    %1132 = vmatprep.subr.mxu0 0.0
    %1133 = vmatpush1.xpose.msra.mxu0 0.0
    %1134 = vmatprep.subr.mxu0 0.0
    %1135 = vmatpush1.xpose.msra.mxu0 0.0
    %1136 = vmatprep.subr.mxu0 0.0
    %1137 = vmatpush1.xpose.msra.mxu0 0.0
    %1138 = vmatprep.subr.mxu0 0.0
    %1139 = vmatpush1.xpose.msra.mxu0 0.0
    %1140 = vmatprep.subr.mxu0 0.0
    %1141 = vmatpush1.xpose.msra.mxu0 0.0
    %1142 = vmatprep.subr.mxu0 0.0
    %1143 = vmatpush1.xpose.msra.mxu0 0.0
    %1144 = vmatprep.subr.mxu0 0.0
    %1145 = vmatpush1.xpose.msra.mxu0 0.0
    %1146 = vmatprep.subr.mxu0 0.0
    %1147 = vmatpush1.xpose.msra.mxu0 0.0
    %1148 = vmatprep.subr.mxu0 0.0
    %1149 = vmatpush1.xpose.msra.mxu0 0.0
    %1150 = vmatprep.subr.mxu0 0.0
    %1151 = vmatpush1.xpose.msra.mxu0 0.0
    %1152 = vmatprep.subr.mxu0 0.0
    %1153 = vmatpush1.xpose.msra.mxu0 0.0
    %1154 = vmatprep.subr.mxu0 0.0
    %1155 = vmatpush1.xpose.msra.mxu0 0.0
    %1156 = vmatprep.subr.mxu0 0.0
    %1157 = vmatpush1.xpose.msra.mxu0 0.0
    %1158 = vmatprep.subr.mxu0 0.0
    %1159 = vmatpush1.xpose.msra.mxu0 0.0
    %1160 = vmatprep.subr.mxu0 0.0
    %1161 = vmatpush1.xpose.msra.mxu0 0.0
    %1162 = vmatprep.subr.mxu0 0.0
    %1163 = vmatpush1.xpose.msra.mxu0 0.0
    %1164 = vmatprep.subr.mxu0 0.0
    %1165 = vmatpush1.xpose.msra.mxu0 0.0
    %1166 = vmatprep.subr.mxu0 0.0
    %1167 = vmatpush1.xpose.msra.mxu0 0.0
    %1168 = vmatprep.subr.mxu0 0.0
    %1169 = vmatpush1.xpose.msra.mxu0 0.0
    %1170 = vmatprep.subr.mxu0 0.0
    %1171 = vmatpush1.xpose.msra.mxu0 0.0
    %1172 = vmatprep.mubr.f32.mxu0 %v961
    %1173 = vmatmul.mubr.f32.gmra.mrb[0].mxu0 %v960
    %v1174 = vpop.f32.mrb[0].mxu0
    %v1175 = vadd.f32 %v1105, %v1174
    %v1176 = vpop.f32.mrb[0].mxu0
    %1177 = vdwg.mxu0
    %v1178 = vadd.f32 %v940, %v1175
    %s1179 = scalar_lea.vmem %s3, 288
    %v1180 = vld [vmem:[%s1179] sm:$0xff]
    %v1181 = vld [vmem:[%s1179 + $0x8] sm:$0xff]
    %v1182 = vld [vmem:[%s1179 + $0x10] sm:$0xff]
    %v1183 = vld [vmem:[%s1179 + $0x18] sm:$0xff]
    %v1184 = vld [vmem:[%s1179 + $0x20] sm:$0xff]
    %v1185 = vld [vmem:[%s1179 + $0x28] sm:$0xff]
    %v1186 = vld [vmem:[%s1179 + $0x30] sm:$0x3]
    %v1187 = vld [vmem:[%s1179 + $0x38] sm:$0x3]
    %v1188 = vld [vmem:[%s1179 + $0x40] sm:$0x3]
    %v1189 = vld [vmem:[%s1179 + $0x48] sm:$0x3]
    %v1190 = vld [vmem:[%s1179 + $0x50] sm:$0x3]
    %v1191 = vld [vmem:[%s1179 + $0x58] sm:$0x3]
    %v1192 = vrot.slane %v474, 6
    %v1193 = vrot.slane %v475, 6
    %v1194 = vrot.slane %v476, 6
    %v1195 = vrot.slane %v477, 6
    %v1196 = vrot.slane %v478, 6
    %v1197 = vrot.slane %v479, 6
    %1204 = vmatprep.subr.mxu0 %v1181
    %1205 = vmatpush1.xpose.msra.mxu0 %v1180
    %1206 = vmatprep.subr.mxu0 %v1187
    %1207 = vmatpush1.xpose.msra.mxu0 %v1186
    %1208 = vmatprep.subr.mxu0 0.0
    %1209 = vmatpush1.xpose.msra.mxu0 0.0
    %1210 = vmatprep.subr.mxu0 0.0
    %1211 = vmatpush1.xpose.msra.mxu0 0.0
    %1212 = vmatprep.subr.mxu0 0.0
    %1213 = vmatpush1.xpose.msra.mxu0 0.0
    %1214 = vmatprep.subr.mxu0 0.0
    %1215 = vmatpush1.xpose.msra.mxu0 0.0
    %1216 = vmatprep.subr.mxu0 0.0
    %1217 = vmatpush1.xpose.msra.mxu0 0.0
    %1218 = vmatprep.subr.mxu0 0.0
    %1219 = vmatpush1.xpose.msra.mxu0 0.0
    %1220 = vmatprep.subr.mxu0 0.0
    %1221 = vmatpush1.xpose.msra.mxu0 0.0
    %1222 = vmatprep.subr.mxu0 0.0
    %1223 = vmatpush1.xpose.msra.mxu0 0.0
    %1224 = vmatprep.subr.mxu0 0.0
    %1225 = vmatpush1.xpose.msra.mxu0 0.0
    %1226 = vmatprep.subr.mxu0 0.0
    %1227 = vmatpush1.xpose.msra.mxu0 0.0
    %1228 = vmatprep.subr.mxu0 0.0
    %1229 = vmatpush1.xpose.msra.mxu0 0.0
    %1230 = vmatprep.subr.mxu0 0.0
    %1231 = vmatpush1.xpose.msra.mxu0 0.0
    %1232 = vmatprep.subr.mxu0 0.0
    %1233 = vmatpush1.xpose.msra.mxu0 0.0
    %1234 = vmatprep.subr.mxu0 0.0
    %1235 = vmatpush1.xpose.msra.mxu0 0.0
    %1236 = vmatprep.subr.mxu0 0.0
    %1237 = vmatpush1.xpose.msra.mxu0 0.0
    %1238 = vmatprep.subr.mxu0 0.0
    %1239 = vmatpush1.xpose.msra.mxu0 0.0
    %1240 = vmatprep.subr.mxu0 0.0
    %1241 = vmatpush1.xpose.msra.mxu0 0.0
    %1242 = vmatprep.subr.mxu0 0.0
    %1243 = vmatpush1.xpose.msra.mxu0 0.0
    %1244 = vmatprep.subr.mxu0 0.0
    %1245 = vmatpush1.xpose.msra.mxu0 0.0
    %1246 = vmatprep.subr.mxu0 0.0
    %1247 = vmatpush1.xpose.msra.mxu0 0.0
    %1248 = vmatprep.subr.mxu0 0.0
    %1249 = vmatpush1.xpose.msra.mxu0 0.0
    %1250 = vmatprep.subr.mxu0 0.0
    %1251 = vmatpush1.xpose.msra.mxu0 0.0
    %1252 = vmatprep.subr.mxu0 0.0
    %1253 = vmatpush1.xpose.msra.mxu0 0.0
    %1254 = vmatprep.subr.mxu0 0.0
    %1255 = vmatpush1.xpose.msra.mxu0 0.0
    %1256 = vmatprep.subr.mxu0 0.0
    %1257 = vmatpush1.xpose.msra.mxu0 0.0
    %1258 = vmatprep.subr.mxu0 0.0
    %1259 = vmatpush1.xpose.msra.mxu0 0.0
    %1260 = vmatprep.subr.mxu0 0.0
    %1261 = vmatpush1.xpose.msra.mxu0 0.0
    %1262 = vmatprep.subr.mxu0 0.0
    %1263 = vmatpush1.xpose.msra.mxu0 0.0
    %1264 = vmatprep.subr.mxu0 0.0
    %1265 = vmatpush1.xpose.msra.mxu0 0.0
    %1266 = vmatprep.subr.mxu0 0.0
    %1267 = vmatpush1.xpose.msra.mxu0 0.0
    %1268 = vmatprep.mubr.f32.mxu0 %v1193
    %1269 = vmatmul.mubr.f32.gmra.mrb[0].mxu0 %v1192
    %v1270 = vpop.f32.mrb[0].mxu0
    %v1271 = vadd.f32 0.0, %v1270
    %v1272 = vpop.f32.mrb[0].mxu0
    %1273 = vdwg.mxu0
    %1274 = vmatprep.subr.mxu0 %v1183
    %1275 = vmatpush1.xpose.msra.mxu0 %v1182
    %1276 = vmatprep.subr.mxu0 %v1189
    %1277 = vmatpush1.xpose.msra.mxu0 %v1188
    %1278 = vmatprep.subr.mxu0 0.0
    %1279 = vmatpush1.xpose.msra.mxu0 0.0
    %1280 = vmatprep.subr.mxu0 0.0
    %1281 = vmatpush1.xpose.msra.mxu0 0.0
    %1282 = vmatprep.subr.mxu0 0.0
    %1283 = vmatpush1.xpose.msra.mxu0 0.0
    %1284 = vmatprep.subr.mxu0 0.0
    %1285 = vmatpush1.xpose.msra.mxu0 0.0
    %1286 = vmatprep.subr.mxu0 0.0
    %1287 = vmatpush1.xpose.msra.mxu0 0.0
    %1288 = vmatprep.subr.mxu0 0.0
    %1289 = vmatpush1.xpose.msra.mxu0 0.0
    %1290 = vmatprep.subr.mxu0 0.0
    %1291 = vmatpush1.xpose.msra.mxu0 0.0
    %1292 = vmatprep.subr.mxu0 0.0
    %1293 = vmatpush1.xpose.msra.mxu0 0.0
    %1294 = vmatprep.subr.mxu0 0.0
    %1295 = vmatpush1.xpose.msra.mxu0 0.0
    %1296 = vmatprep.subr.mxu0 0.0
    %1297 = vmatpush1.xpose.msra.mxu0 0.0
    %1298 = vmatprep.subr.mxu0 0.0
    %1299 = vmatpush1.xpose.msra.mxu0 0.0
    %1300 = vmatprep.subr.mxu0 0.0
    %1301 = vmatpush1.xpose.msra.mxu0 0.0
    %1302 = vmatprep.subr.mxu0 0.0
    %1303 = vmatpush1.xpose.msra.mxu0 0.0
    %1304 = vmatprep.subr.mxu0 0.0
    %1305 = vmatpush1.xpose.msra.mxu0 0.0
    %1306 = vmatprep.subr.mxu0 0.0
    %1307 = vmatpush1.xpose.msra.mxu0 0.0
    %1308 = vmatprep.subr.mxu0 0.0
    %1309 = vmatpush1.xpose.msra.mxu0 0.0
    %1310 = vmatprep.subr.mxu0 0.0
    %1311 = vmatpush1.xpose.msra.mxu0 0.0
    %1312 = vmatprep.subr.mxu0 0.0
    %1313 = vmatpush1.xpose.msra.mxu0 0.0
    %1314 = vmatprep.subr.mxu0 0.0
    %1315 = vmatpush1.xpose.msra.mxu0 0.0
    %1316 = vmatprep.subr.mxu0 0.0
    %1317 = vmatpush1.xpose.msra.mxu0 0.0
    %1318 = vmatprep.subr.mxu0 0.0
    %1319 = vmatpush1.xpose.msra.mxu0 0.0
    %1320 = vmatprep.subr.mxu0 0.0
    %1321 = vmatpush1.xpose.msra.mxu0 0.0
    %1322 = vmatprep.subr.mxu0 0.0
    %1323 = vmatpush1.xpose.msra.mxu0 0.0
    %1324 = vmatprep.subr.mxu0 0.0
    %1325 = vmatpush1.xpose.msra.mxu0 0.0
    %1326 = vmatprep.subr.mxu0 0.0
    %1327 = vmatpush1.xpose.msra.mxu0 0.0
    %1328 = vmatprep.subr.mxu0 0.0
    %1329 = vmatpush1.xpose.msra.mxu0 0.0
    %1330 = vmatprep.subr.mxu0 0.0
    %1331 = vmatpush1.xpose.msra.mxu0 0.0
    %1332 = vmatprep.subr.mxu0 0.0
    %1333 = vmatpush1.xpose.msra.mxu0 0.0
    %1334 = vmatprep.subr.mxu0 0.0
    %1335 = vmatpush1.xpose.msra.mxu0 0.0
    %1336 = vmatprep.subr.mxu0 0.0
    %1337 = vmatpush1.xpose.msra.mxu0 0.0
    %1338 = vmatprep.mubr.f32.mxu0 %v1195
    %1339 = vmatmul.mubr.f32.gmra.mrb[0].mxu0 %v1194
    %v1340 = vpop.f32.mrb[0].mxu0
    %v1341 = vadd.f32 %v1271, %v1340
    %v1342 = vpop.f32.mrb[0].mxu0
    %1343 = vdwg.mxu0
    %1344 = vmatprep.subr.mxu0 %v1185
    %1345 = vmatpush1.xpose.msra.mxu0 %v1184
    %1346 = vmatprep.subr.mxu0 %v1191
    %1347 = vmatpush1.xpose.msra.mxu0 %v1190
    %1348 = vmatprep.subr.mxu0 0.0
    %1349 = vmatpush1.xpose.msra.mxu0 0.0
    %1350 = vmatprep.subr.mxu0 0.0
    %1351 = vmatpush1.xpose.msra.mxu0 0.0
    %1352 = vmatprep.subr.mxu0 0.0
    %1353 = vmatpush1.xpose.msra.mxu0 0.0
    %1354 = vmatprep.subr.mxu0 0.0
    %1355 = vmatpush1.xpose.msra.mxu0 0.0
    %1356 = vmatprep.subr.mxu0 0.0
    %1357 = vmatpush1.xpose.msra.mxu0 0.0
    %1358 = vmatprep.subr.mxu0 0.0
    %1359 = vmatpush1.xpose.msra.mxu0 0.0
    %1360 = vmatprep.subr.mxu0 0.0
    %1361 = vmatpush1.xpose.msra.mxu0 0.0
    %1362 = vmatprep.subr.mxu0 0.0
    %1363 = vmatpush1.xpose.msra.mxu0 0.0
    %1364 = vmatprep.subr.mxu0 0.0
    %1365 = vmatpush1.xpose.msra.mxu0 0.0
    %1366 = vmatprep.subr.mxu0 0.0
    %1367 = vmatpush1.xpose.msra.mxu0 0.0
    %1368 = vmatprep.subr.mxu0 0.0
    %1369 = vmatpush1.xpose.msra.mxu0 0.0
    %1370 = vmatprep.subr.mxu0 0.0
    %1371 = vmatpush1.xpose.msra.mxu0 0.0
    %1372 = vmatprep.subr.mxu0 0.0
    %1373 = vmatpush1.xpose.msra.mxu0 0.0
    %1374 = vmatprep.subr.mxu0 0.0
    %1375 = vmatpush1.xpose.msra.mxu0 0.0
    %1376 = vmatprep.subr.mxu0 0.0
    %1377 = vmatpush1.xpose.msra.mxu0 0.0
    %1378 = vmatprep.subr.mxu0 0.0
    %1379 = vmatpush1.xpose.msra.mxu0 0.0
    %1380 = vmatprep.subr.mxu0 0.0
    %1381 = vmatpush1.xpose.msra.mxu0 0.0
    %1382 = vmatprep.subr.mxu0 0.0
    %1383 = vmatpush1.xpose.msra.mxu0 0.0
    %1384 = vmatprep.subr.mxu0 0.0
    %1385 = vmatpush1.xpose.msra.mxu0 0.0
    %1386 = vmatprep.subr.mxu0 0.0
    %1387 = vmatpush1.xpose.msra.mxu0 0.0
    %1388 = vmatprep.subr.mxu0 0.0
    %1389 = vmatpush1.xpose.msra.mxu0 0.0
    %1390 = vmatprep.subr.mxu0 0.0
    %1391 = vmatpush1.xpose.msra.mxu0 0.0
    %1392 = vmatprep.subr.mxu0 0.0
    %1393 = vmatpush1.xpose.msra.mxu0 0.0
    %1394 = vmatprep.subr.mxu0 0.0
    %1395 = vmatpush1.xpose.msra.mxu0 0.0
    %1396 = vmatprep.subr.mxu0 0.0
    %1397 = vmatpush1.xpose.msra.mxu0 0.0
    %1398 = vmatprep.subr.mxu0 0.0
    %1399 = vmatpush1.xpose.msra.mxu0 0.0
    %1400 = vmatprep.subr.mxu0 0.0
    %1401 = vmatpush1.xpose.msra.mxu0 0.0
    %1402 = vmatprep.subr.mxu0 0.0
    %1403 = vmatpush1.xpose.msra.mxu0 0.0
    %1404 = vmatprep.subr.mxu0 0.0
    %1405 = vmatpush1.xpose.msra.mxu0 0.0
    %1406 = vmatprep.subr.mxu0 0.0
    %1407 = vmatpush1.xpose.msra.mxu0 0.0
    %1408 = vmatprep.mubr.f32.mxu0 %v1197
    %1409 = vmatmul.mubr.f32.gmra.mrb[0].mxu0 %v1196
    %v1410 = vpop.f32.mrb[0].mxu0
    %v1411 = vadd.f32 %v1341, %v1410
    %v1412 = vpop.f32.mrb[0].mxu0
    %1413 = vdwg.mxu0
    %v1414 = vadd.f32 %v1178, %v1411
    %v1415 = vld [vmem:[%s4] sm:$0x1]
    %v1417 = vlaneseq
    %v1418 = vshrl.u32 %v1417, 7
    %v1419 = vsub.s32 0, %v1418
    %v1420 = vrot.slane %v1415, %v1419
    %v1422 = vadd.f32 %v1414, %v1420
    %vm1423 = vcmask 74752
    %1424 = vst.msk [vmem:[#allocation2] sm:$0x3] %vm1423, %v1422
    // Predicated region
    $region22: #{simple_cnn_forward.1} parent=1 // pred_check
      _
    $region23: #{simple_cnn_forward.1} parent=1 // pred_check_branch
      %1426 = sbr.rel (0) target = $region25
    $region24: #{simple_cnn_forward.1} parent=1 // pred_region
      %s1428 = ssub.s32 32, 32
      %1429 = vsyncadd [#allocation3], %s1428
      %s1431 = sshll.u32 [#allocation2], 4
      %s1432 = int_to_ptr.vmem [resolvable:$true] %s1431
      %1434 = dma.vmem_to_hbm [thread:$0]  %s1432, 32, %s5, [#allocation3]
    $region25: #{simple_cnn_forward.1} parent=1 // pred_fallthru
      _
    // Predicated region
    $region26: #{simple_cnn_forward.1} parent=1 // pred_check
      _
    $region27: #{simple_cnn_forward.1} parent=1 // pred_check_branch
      %1436 = sbr.rel (0) target = $region29
    $region28: #{simple_cnn_forward.1} parent=1 // pred_region
      _
    $region29: #{simple_cnn_forward.1} parent=1 // pred_fallthru
      _
    // Predicated region
    $region30: #{simple_cnn_forward.1} parent=1 // pred_check
      _
    $region31: #{simple_cnn_forward.1} parent=1 // pred_check_branch
      %1438 = sbr.rel (0) target = $region33
    $region32: #{simple_cnn_forward.1} parent=1 // pred_region
      %1439 = dma.done [#allocation3], 32
    $region33: #{simple_cnn_forward.1} parent=1 // pred_fallthru
      _
    // Predicated region
    $region34: #{simple_cnn_forward.1} parent=1 // pred_check
      _
    $region35: #{simple_cnn_forward.1} parent=1 // pred_check_branch
      %1441 = sbr.rel (0) target = $region37
    $region36: #{simple_cnn_forward.1} parent=1 // pred_region
      _
    $region37: #{simple_cnn_forward.1} parent=1 // pred_fallthru
      _
    %1442 = vsyncpa [#allocation3], 1

</llo_original>
